<compile_context>
chip_gen: v6e
topology: v6e:2x2x1
jax: 0.10.0
libtpu: 0.0.40
codegen_flags: <defaults>
</compile_context>

<pallas_src>
import functools

import jax
import jax.numpy as jnp
from jax import lax
from jax.experimental import pallas as pl
from jax.experimental.pallas import tpu as pltpu


def _round_up(x, m):
    return (x + m - 1) // m * m


def _cdiv(a, b):
    return (a + b - 1) // b


def _proj_kernel(zu_ref, nzu_ref, x_ref, pz_ref, pnz_ref, *, tile, n_rows, ragged):
    """Per-core resident accumulators: Pz += zU_tile^T @ X_tile, Pnz += nU_tile^T @ X_tile."""
    c = pl.program_id(0)
    j = pl.program_id(1)

    @pl.when(j == 0)
    def _():
        pz_ref[...] = jnp.zeros_like(pz_ref)
        pnz_ref[...] = jnp.zeros_like(pnz_ref)

    x = x_ref[...]
    zu = zu_ref[...]
    nzu = nzu_ref[...]
    if ragged:
        # Ragged last tile / dead (clamped) tiles: zero every out-of-bounds row
        # on BOTH operands before the reduction -- OOB tile contents are
        # unspecified (stale VMEM, possibly NaN), so masking one side is not
        # enough (0 * NaN = NaN).
        blk = c * pl.num_programs(1) + j
        rows = blk * tile + lax.broadcasted_iota(jnp.int32, (tile, 1), 0)
        valid = rows < n_rows
        x = jnp.where(valid, x, 0.0)
        zu = jnp.where(valid, zu, 0.0)
        nzu = jnp.where(valid, nzu, 0.0)
    x = x.astype(jnp.bfloat16)
    dn = (((0,), (0,)), ((), ()))  # contract over rows: U^T @ X
    pz_ref[...] += lax.dot_general(zu.astype(jnp.bfloat16), x, dn,
                                   preferred_element_type=jnp.float32)[None]
    pnz_ref[...] += lax.dot_general(nzu.astype(jnp.bfloat16), x, dn,
                                    preferred_element_type=jnp.float32)[None]


def _apply_kernel(x_ref, zu_ref, nzu_ref, wp_ref, cz_ref, cnz_ref, b_ref, out_ref):
    """out_tile = X @ W_part + zU @ Cz + nU @ Cnz + bias (f32 accumulation).

    Pure map over row tiles: garbage rows from a ragged input read only produce
    garbage output rows, which Pallas masks on store.
    """
    acc = jnp.dot(x_ref[...].astype(jnp.bfloat16), wp_ref[...],
                  preferred_element_type=jnp.float32)
    acc += jnp.dot(zu_ref[...].astype(jnp.bfloat16), cz_ref[...],
                   preferred_element_type=jnp.float32)
    acc += jnp.dot(nzu_ref[...].astype(jnp.bfloat16), cnz_ref[...],
                   preferred_element_type=jnp.float32)
    out_ref[...] = (acc + b_ref[...]).astype(out_ref.dtype)


@functools.partial(jax.jit,
                   static_argnames=("coeffs", "eigengap", "tile_n", "out_dtype"))
def _forward_impl(X, Wstack, zero_U, nonzero_U, nonzero_w, bias, *,
                  coeffs, eigengap, tile_n, out_dtype):
    N, Cin = X.shape
    K, _, Cout = Wstack.shape
    R0 = zero_U.shape[1]
    R1 = nonzero_U.shape[1]
    R = R0 + R1
    eg = float(eigengap)
    hi = lax.Precision.HIGHEST

    alphas = jnp.array([c[0] for c in coeffs], jnp.float32)
    betas = jnp.array([c[1] for c in coeffs], jnp.float32)
    gammas = jnp.array([c[2] for c in coeffs], jnp.float32)

    # Fold the K filters into single weight matrices (tiny parameter glue).
    W_part = jnp.einsum("k,kio->io", eg * gammas, Wstack, precision=hi)        # [Cin, Cout]
    W_z = jnp.einsum("k,kio->io", alphas - eg * gammas, Wstack, precision=hi)  # [Cin, Cout]

    # Geometry: no host-side padding / casting / concat of the big [N, *] arrays.
    tile = max(8, min(_round_up(int(tile_n), 8), _round_up(N, 8)))
    total_tiles = _cdiv(N, tile)
    ncores = 2 if total_tiles >= 2 else 1       # size-2 "parallel" split -> both v7x TCs
    tiles_per_core = _cdiv(total_tiles, ncores)
    ragged = (N % tile != 0) or (ncores * tiles_per_core != total_tiles)

    def row_idx(c, j, h=tiles_per_core, t=total_tiles):
        # Clamp dead tail steps to the last valid tile; the kernel masks them out.
        return (jnp.minimum(c * h + j, t - 1), 0)

    proj_cost = pl.CostEstimate(
        flops=2 * N * R * Cin,
        transcendentals=0,
        bytes_accessed=N * (Cin + R) * 4 + ncores * R * Cin * 4)

    # ---- stage 1: Pz = zU^T X, Pnz = nU^T X, per-core resident accumulators --
    pz_partials, pnz_partials = pl.pallas_call(
        functools.partial(_proj_kernel, tile=tile, n_rows=N, ragged=ragged),
        grid=(ncores, tiles_per_core),
        in_specs=[
            pl.BlockSpec((tile, R0), row_idx),
            pl.BlockSpec((tile, R1), row_idx),
            pl.BlockSpec((tile, Cin), row_idx),
        ],
        out_specs=[
            pl.BlockSpec((1, R0, Cin), lambda c, j: (c, 0, 0)),
            pl.BlockSpec((1, R1, Cin), lambda c, j: (c, 0, 0)),
        ],
        out_shape=(jax.ShapeDtypeStruct((ncores, R0, Cin), jnp.float32),
                   jax.ShapeDtypeStruct((ncores, R1, Cin), jnp.float32)),
        compiler_params=pltpu.CompilerParams(
            dimension_semantics=("parallel", "arbitrary")),
        cost_estimate=proj_cost,
    )(zero_U, nonzero_U, X)

    Pz = pz_partials.sum(axis=0)    # [R0, Cin]
    Pnz = pnz_partials.sum(axis=0)  # [R1, Cin]

    # ---- tiny low-rank correction (plain XLA; O(R*Cin*Cout), R = R0+R1) ------
    cnz = (betas[:, None] / nonzero_w[None, :] - gammas[:, None]) * eg         # [K, R1]
    zero_part = jnp.dot(Pz, W_z, precision=hi)                                 # [R0, Cout]
    nonzero_part = jnp.einsum("kr,rc,kco->ro", cnz, Pnz, Wstack, precision=hi) # [R1, Cout]

    W_part_b = W_part.astype(jnp.bfloat16)
    Cz_b = zero_part.astype(jnp.bfloat16)
    Cnz_b = nonzero_part.astype(jnp.bfloat16)
    bias_row = bias.reshape(1, Cout).astype(jnp.float32)

    out_itemsize = jnp.dtype(out_dtype).itemsize
    apply_cost = pl.CostEstimate(
        flops=2 * N * (Cin + R) * Cout,
        transcendentals=0,
        bytes_accessed=(N * (Cin + R) * 4 + N * Cout * out_itemsize
                        + (Cin + R) * Cout * 2 + Cout * 4))

    # ---- stage 2: out = X @ W_part + zU @ Cz + nU @ Cnz + bias ---------------
    # Output is exactly (N, Cout): no Cout padding, no post-kernel slice; the
    # ragged last row tile is store-masked by Pallas.
    out = pl.pallas_call(
        _apply_kernel,
        grid=(_cdiv(N, tile),),
        in_specs=[
            pl.BlockSpec((tile, Cin), lambda i: (i, 0)),
            pl.BlockSpec((tile, R0), lambda i: (i, 0)),
            pl.BlockSpec((tile, R1), lambda i: (i, 0)),
            pl.BlockSpec((Cin, Cout), lambda i: (0, 0)),
            pl.BlockSpec((R0, Cout), lambda i: (0, 0)),
            pl.BlockSpec((R1, Cout), lambda i: (0, 0)),
            pl.BlockSpec((1, Cout), lambda i: (0, 0)),
        ],
        out_specs=pl.BlockSpec((tile, Cout), lambda i: (i, 0)),
        out_shape=jax.ShapeDtypeStruct((N, Cout), out_dtype),
        compiler_params=pltpu.CompilerParams(
            dimension_semantics=("parallel",)),
        cost_estimate=apply_cost,
    )(X, zero_U, nonzero_U, W_part_b, Cz_b, Cnz_b, bias_row)

    return out


def pinv_conv_forward(X, Wstack, zero_U, nonzero_U, nonzero_w, bias, *,
                      coeffs, eigengap, tile_n=1024, out_dtype=jnp.float32):
    coeffs_static = tuple(tuple(float(v) for v in c) for c in coeffs)
    return _forward_impl(X, Wstack, zero_U, nonzero_U, nonzero_w, bias,
                         coeffs=coeffs_static, eigengap=float(eigengap),
                         tile_n=int(tile_n), out_dtype=out_dtype)


def reference_forward(X, Wstack, zero_U, nonzero_U, nonzero_w, bias, *,
                      coeffs, eigengap):
    """Pure-JAX transliteration of PinvConv.forward (eval mode)."""
    hi = lax.Precision.HIGHEST
    zero_part = 0.0
    nonzero_part = 0.0
    result = 0.0
    for k, (alpha, beta, gamma) in enumerate(coeffs):
        Y = jnp.dot(X, Wstack[k], precision=hi)
        if alpha != 0 or gamma != 0:
            zero_part = zero_part + (alpha - eigengap * gamma) * jnp.dot(
                zero_U.T, Y, precision=hi)
        if beta != 0 or gamma != 0:
            nonzero_part = nonzero_part + (
                beta / nonzero_w[:, None] - gamma) * eigengap * jnp.dot(
                nonzero_U.T, Y, precision=hi)
        if gamma != 0:
            result = result + eigengap * gamma * Y
    if not isinstance(zero_part, float):
        result = result + jnp.dot(zero_U, zero_part, precision=hi)
    if not isinstance(nonzero_part, float):
        result = result + jnp.dot(nonzero_U, nonzero_part, precision=hi)
    result = result + bias
    return result


if __name__ == "__main__":
    # Small shapes; N deliberately not a multiple of the row tile so the ragged
    # masking, the 2-way core split and the dead-tile clamp are all exercised.
    N, Cin, Cout = 200, 32, 64
    R0, R1 = 8, 16
    # zero-impulse / pseudoinverse / high-pass filter coefficients
    coeffs = [(1.0, 0.0, 0.0), (0.0, 1.0, 0.0), (0.0, 0.0, 1.0)]
    K = len(coeffs)
    eigengap = 0.5

    key = jax.random.PRNGKey(0)
    ks = jax.random.split(key, 6)
    X = jax.random.normal(ks[0], (N, Cin), jnp.float32)
    # Deterministic synthetic parameter init (module declares them uninitialized).
    Wstack = jax.random.normal(ks[1], (K, Cin, Cout), jnp.float32) / jnp.sqrt(Cin)
    zero_U = jax.random.normal(ks[2], (N, R0), jnp.float32) / jnp.sqrt(N)
    nonzero_U = jax.random.normal(ks[3], (N, R1), jnp.float32) / jnp.sqrt(N)
    nonzero_w = jax.random.uniform(ks[4], (R1,), jnp.float32, 0.5, 1.5)
    bias = 0.1 * jax.random.normal(ks[5], (Cout,), jnp.float32)

    out = pinv_conv_forward(X, Wstack, zero_U, nonzero_U, nonzero_w, bias,
                            coeffs=coeffs, eigengap=eigengap, tile_n=48)
    out = jax.block_until_ready(out)

    ref = reference_forward(X, Wstack, zero_U, nonzero_U, nonzero_w, bias,
                            coeffs=coeffs, eigengap=eigengap)
    assert out.shape == (N, Cout) and out.dtype == jnp.float32
    assert jnp.allclose(out, ref, rtol=5e-2, atol=5e-2), "mismatch vs reference"
    print("KERNEL_OK")
</pallas_src>

<mosaic_0001>
module attributes {stable_mosaic.version = 11 : i64} {
  func.func @_apply_kernel(%arg0: i32, %arg1: memref<48x32xf32, #tpu.memory_space<vmem>>, %arg2: memref<48x8xf32, #tpu.memory_space<vmem>>, %arg3: memref<48x16xf32, #tpu.memory_space<vmem>>, %arg4: memref<32x64xbf16, #tpu.memory_space<vmem>>, %arg5: memref<8x64xbf16, #tpu.memory_space<vmem>>, %arg6: memref<16x64xbf16, #tpu.memory_space<vmem>>, %arg7: memref<1x64xf32, #tpu.memory_space<vmem>>, %arg8: memref<48x64xf32, #tpu.memory_space<vmem>>) attributes {dimension_semantics = [#tpu.dimension_semantics<parallel>], iteration_bounds = array<i64: 5>, scalar_prefetch = 0 : i64, scratch_operands = 0 : i64, tpu.core_type = #tpu.core_type<tc>, window_params = [{transform_indices = @transform_0, window_bounds = array<i64: 48, 32>}, {transform_indices = @transform_1, window_bounds = array<i64: 48, 8>}, {transform_indices = @transform_2, window_bounds = array<i64: 48, 16>}, {pipeline_mode = #tpu.pipeline_mode<synchronous>, transform_indices = @transform_3, window_bounds = array<i64: 32, 64>}, {pipeline_mode = #tpu.pipeline_mode<synchronous>, transform_indices = @transform_4, window_bounds = array<i64: 8, 64>}, {pipeline_mode = #tpu.pipeline_mode<synchronous>, transform_indices = @transform_5, window_bounds = array<i64: 16, 64>}, {pipeline_mode = #tpu.pipeline_mode<synchronous>, transform_indices = @transform_6, window_bounds = array<i64: 1, 64>}, {transform_indices = @transform_7, window_bounds = array<i64: 48, 64>}]} {
    %c0 = arith.constant 0 : index
    %c0_0 = arith.constant 0 : index
    %0 = vector.load %arg1[%c0, %c0_0] : memref<48x32xf32, #tpu.memory_space<vmem>>, vector<48x32xf32>
    %1 = arith.truncf %0 : vector<48x32xf32> to vector<48x32xbf16>
    %c0_1 = arith.constant 0 : index
    %c0_2 = arith.constant 0 : index
    %2 = vector.load %arg4[%c0_1, %c0_2] : memref<32x64xbf16, #tpu.memory_space<vmem>>, vector<32x64xbf16>
    %cst = arith.constant dense<0.000000e+00> : vector<48x64xf32>
    %3 = tpu.matmul %1, %2, %cst {dimension_numbers = #tpu.dot_dimension_numbers<[1], [0], [0], [1], [0, 0, 1, 1], [], []>} : vector<48x32xbf16>, vector<32x64xbf16>, vector<48x64xf32> -> vector<48x64xf32>
    %c0_3 = arith.constant 0 : index
    %c0_4 = arith.constant 0 : index
    %4 = vector.load %arg2[%c0_3, %c0_4] : memref<48x8xf32, #tpu.memory_space<vmem>>, vector<48x8xf32>
    %5 = arith.truncf %4 : vector<48x8xf32> to vector<48x8xbf16>
    %c0_5 = arith.constant 0 : index
    %c0_6 = arith.constant 0 : index
    %6 = vector.load %arg5[%c0_5, %c0_6] : memref<8x64xbf16, #tpu.memory_space<vmem>>, vector<8x64xbf16>
    %cst_7 = arith.constant dense<0.000000e+00> : vector<48x64xf32>
    %7 = tpu.matmul %5, %6, %cst_7 {dimension_numbers = #tpu.dot_dimension_numbers<[1], [0], [0], [1], [0, 0, 1, 1], [], []>} : vector<48x8xbf16>, vector<8x64xbf16>, vector<48x64xf32> -> vector<48x64xf32>
    %8 = arith.addf %3, %7 : vector<48x64xf32>
    %c0_8 = arith.constant 0 : index
    %c0_9 = arith.constant 0 : index
    %9 = vector.load %arg3[%c0_8, %c0_9] : memref<48x16xf32, #tpu.memory_space<vmem>>, vector<48x16xf32>
    %10 = arith.truncf %9 : vector<48x16xf32> to vector<48x16xbf16>
    %c0_10 = arith.constant 0 : index
    %c0_11 = arith.constant 0 : index
    %11 = vector.load %arg6[%c0_10, %c0_11] : memref<16x64xbf16, #tpu.memory_space<vmem>>, vector<16x64xbf16>
    %cst_12 = arith.constant dense<0.000000e+00> : vector<48x64xf32>
    %12 = tpu.matmul %10, %11, %cst_12 {dimension_numbers = #tpu.dot_dimension_numbers<[1], [0], [0], [1], [0, 0, 1, 1], [], []>} : vector<48x16xbf16>, vector<16x64xbf16>, vector<48x64xf32> -> vector<48x64xf32>
    %13 = arith.addf %8, %12 : vector<48x64xf32>
    %c0_13 = arith.constant 0 : index
    %c0_14 = arith.constant 0 : index
    %14 = vector.load %arg7[%c0_13, %c0_14] : memref<1x64xf32, #tpu.memory_space<vmem>>, vector<1x64xf32>
    %15 = vector.broadcast %14 : vector<1x64xf32> to vector<48x64xf32>
    %16 = arith.addf %13, %15 : vector<48x64xf32>
    %c0_15 = arith.constant 0 : index
    %c0_16 = arith.constant 0 : index
    %17 = vector.load %arg8[%c0_15, %c0_16] : memref<48x64xf32, #tpu.memory_space<vmem>>, vector<48x64xf32>
    tpu.vector_store %arg8[%c0_15, %c0_16], %16 {strides = array<i32>} : memref<48x64xf32, #tpu.memory_space<vmem>>, vector<48x64xf32>,
    return
  }
  func.func @transform_0(%arg0: i32) -> (i32, i32) {
    %c0_i32 = arith.constant 0 : i32
    %c0_i32_0 = arith.constant 0 : i32
    return %arg0, %c0_i32 : i32, i32
  }
  func.func @transform_1(%arg0: i32) -> (i32, i32) {
    %c0_i32 = arith.constant 0 : i32
    %c0_i32_0 = arith.constant 0 : i32
    return %arg0, %c0_i32 : i32, i32
  }
  func.func @transform_2(%arg0: i32) -> (i32, i32) {
    %c0_i32 = arith.constant 0 : i32
    %c0_i32_0 = arith.constant 0 : i32
    return %arg0, %c0_i32 : i32, i32
  }
  func.func @transform_3(%arg0: i32) -> (i32, i32) {
    %c0_i32 = arith.constant 0 : i32
    %c0_i32_0 = arith.constant 0 : i32
    %c0_i32_1 = arith.constant 0 : i32
    return %c0_i32, %c0_i32_0 : i32, i32
  }
  func.func @transform_4(%arg0: i32) -> (i32, i32) {
    %c0_i32 = arith.constant 0 : i32
    %c0_i32_0 = arith.constant 0 : i32
    %c0_i32_1 = arith.constant 0 : i32
    return %c0_i32, %c0_i32_0 : i32, i32
  }
  func.func @transform_5(%arg0: i32) -> (i32, i32) {
    %c0_i32 = arith.constant 0 : i32
    %c0_i32_0 = arith.constant 0 : i32
    %c0_i32_1 = arith.constant 0 : i32
    return %c0_i32, %c0_i32_0 : i32, i32
  }
  func.func @transform_6(%arg0: i32) -> (i32, i32) {
    %c0_i32 = arith.constant 0 : i32
    %c0_i32_0 = arith.constant 0 : i32
    %c0_i32_1 = arith.constant 0 : i32
    return %c0_i32, %c0_i32_0 : i32, i32
  }
  func.func @transform_7(%arg0: i32) -> (i32, i32) {
    %c0_i32 = arith.constant 0 : i32
    %c0_i32_0 = arith.constant 0 : i32
    return %arg0, %c0_i32 : i32, i32
  }
}

module attributes {stable_mosaic.version = 11 : i64} {
  func.func @_proj_kernel(%arg0: i32, %arg1: i32, %arg2: memref<48x8xf32, #tpu.memory_space<vmem>>, %arg3: memref<48x16xf32, #tpu.memory_space<vmem>>, %arg4: memref<48x32xf32, #tpu.memory_space<vmem>>, %arg5: memref<1x8x32xf32, #tpu.memory_space<vmem>>, %arg6: memref<1x16x32xf32, #tpu.memory_space<vmem>>) attributes {dimension_semantics = [#tpu.dimension_semantics<parallel>, #tpu.dimension_semantics<arbitrary>], iteration_bounds = array<i64: 2, 3>, scalar_prefetch = 0 : i64, scratch_operands = 0 : i64, tpu.core_type = #tpu.core_type<tc>, window_params = [{transform_indices = @transform_0, window_bounds = array<i64: 48, 8>}, {transform_indices = @transform_1, window_bounds = array<i64: 48, 16>}, {transform_indices = @transform_2, window_bounds = array<i64: 48, 32>}, {transform_indices = @transform_3, window_bounds = array<i64: 1, 8, 32>}, {transform_indices = @transform_4, window_bounds = array<i64: 1, 16, 32>}]} {
    %c0_i32 = arith.constant 0 : i32
    %0 = arith.cmpi eq, %arg1, %c0_i32 : i32
    %1 = arith.extui %0 : i1 to i32
    %c0_i32_0 = arith.constant 0 : i32
    %2 = arith.cmpi ne, %1, %c0_i32_0 : i32
    scf.if %2 {
      %cst_22 = arith.constant 0.000000e+00 : f32
      %39 = vector.broadcast %cst_22 : f32 to vector<1x8x32xf32>
      %c0_23 = arith.constant 0 : index
      %c0_24 = arith.constant 0 : index
      %c0_25 = arith.constant 0 : index
      %40 = vector.load %arg5[%c0_23, %c0_24, %c0_25] : memref<1x8x32xf32, #tpu.memory_space<vmem>>, vector<1x8x32xf32>
      tpu.vector_store %arg5[%c0_23, %c0_24, %c0_25], %39 {strides = array<i32>} : memref<1x8x32xf32, #tpu.memory_space<vmem>>, vector<1x8x32xf32>,
      %cst_26 = arith.constant 0.000000e+00 : f32
      %41 = vector.broadcast %cst_26 : f32 to vector<1x16x32xf32>
      %c0_27 = arith.constant 0 : index
      %c0_28 = arith.constant 0 : index
      %c0_29 = arith.constant 0 : index
      %42 = vector.load %arg6[%c0_27, %c0_28, %c0_29] : memref<1x16x32xf32, #tpu.memory_space<vmem>>, vector<1x16x32xf32>
      tpu.vector_store %arg6[%c0_27, %c0_28, %c0_29], %41 {strides = array<i32>} : memref<1x16x32xf32, #tpu.memory_space<vmem>>, vector<1x16x32xf32>,
    } else {
    }
    %c0 = arith.constant 0 : index
    %c0_1 = arith.constant 0 : index
    %3 = vector.load %arg4[%c0, %c0_1] : memref<48x32xf32, #tpu.memory_space<vmem>>, vector<48x32xf32>
    %c0_2 = arith.constant 0 : index
    %c0_3 = arith.constant 0 : index
    %4 = vector.load %arg2[%c0_2, %c0_3] : memref<48x8xf32, #tpu.memory_space<vmem>>, vector<48x8xf32>
    %c0_4 = arith.constant 0 : index
    %c0_5 = arith.constant 0 : index
    %5 = vector.load %arg3[%c0_4, %c0_5] : memref<48x16xf32, #tpu.memory_space<vmem>>, vector<48x16xf32>
    %c3_i32 = arith.constant 3 : i32
    %6 = arith.muli %arg0, %c3_i32 : i32
    %7 = arith.addi %6, %arg1 : i32
    %c48_i32 = arith.constant 48 : i32
    %8 = arith.muli %7, %c48_i32 : i32
    %9 = tpu.iota {dimensions = array<i32: 0>} : vector<48x1xi32>
    %10 = vector.broadcast %8 : i32 to vector<48x1xi32>
    %11 = arith.addi %10, %9 : vector<48x1xi32>
    %c200_i32 = arith.constant 200 : i32
    %12 = vector.broadcast %c200_i32 : i32 to vector<48x1xi32>
    %13 = arith.cmpi slt, %11, %12 : vector<48x1xi32>
    %cst = arith.constant 0.000000e+00 : f32
    %14 = vector.shape_cast %13 : vector<48x1xi1> to vector<48x1xi1>
    %15 = vector.broadcast %14 : vector<48x1xi1> to vector<48x32xi1>
    %16 = vector.broadcast %cst : f32 to vector<48x32xf32>
    %17 = arith.select %15, %3, %16 : vector<48x32xi1>, vector<48x32xf32>
    %cst_6 = arith.constant 0.000000e+00 : f32
    %18 = vector.shape_cast %13 : vector<48x1xi1> to vector<48x1xi1>
    %19 = vector.broadcast %18 : vector<48x1xi1> to vector<48x8xi1>
    %20 = vector.broadcast %cst_6 : f32 to vector<48x8xf32>
    %21 = arith.select %19, %4, %20 : vector<48x8xi1>, vector<48x8xf32>
    %cst_7 = arith.constant 0.000000e+00 : f32
    %22 = vector.shape_cast %13 : vector<48x1xi1> to vector<48x1xi1>
    %23 = vector.broadcast %22 : vector<48x1xi1> to vector<48x16xi1>
    %24 = vector.broadcast %cst_7 : f32 to vector<48x16xf32>
    %25 = arith.select %23, %5, %24 : vector<48x16xi1>, vector<48x16xf32>
    %26 = arith.truncf %17 : vector<48x32xf32> to vector<48x32xbf16>
    %c0_8 = arith.constant 0 : index
    %c0_9 = arith.constant 0 : index
    %c0_10 = arith.constant 0 : index
    %27 = vector.load %arg5[%c0_8, %c0_9, %c0_10] : memref<1x8x32xf32, #tpu.memory_space<vmem>>, vector<1x8x32xf32>
    %28 = arith.truncf %21 : vector<48x8xf32> to vector<48x8xbf16>
    %cst_11 = arith.constant dense<0.000000e+00> : vector<8x32xf32>
    %29 = tpu.matmul %28, %26, %cst_11 {dimension_numbers = #tpu.dot_dimension_numbers<[0], [0], [1], [1], [0, 1, 1, 1], [], []>} : vector<48x8xbf16>, vector<48x32xbf16>, vector<8x32xf32> -> vector<8x32xf32>
    %30 = vector.shape_cast %29 : vector<8x32xf32> to vector<1x8x32xf32>
    %31 = arith.addf %27, %30 : vector<1x8x32xf32>
    %c0_12 = arith.constant 0 : index
    %c0_13 = arith.constant 0 : index
    %c0_14 = arith.constant 0 : index
    %32 = vector.load %arg5[%c0_12, %c0_13, %c0_14] : memref<1x8x32xf32, #tpu.memory_space<vmem>>, vector<1x8x32xf32>
    tpu.vector_store %arg5[%c0_12, %c0_13, %c0_14], %31 {strides = array<i32>} : memref<1x8x32xf32, #tpu.memory_space<vmem>>, vector<1x8x32xf32>,
    %c0_15 = arith.constant 0 : index
    %c0_16 = arith.constant 0 : index
    %c0_17 = arith.constant 0 : index
    %33 = vector.load %arg6[%c0_15, %c0_16, %c0_17] : memref<1x16x32xf32, #tpu.memory_space<vmem>>, vector<1x16x32xf32>
    %34 = arith.truncf %25 : vector<48x16xf32> to vector<48x16xbf16>
    %cst_18 = arith.constant dense<0.000000e+00> : vector<16x32xf32>
    %35 = tpu.matmul %34, %26, %cst_18 {dimension_numbers = #tpu.dot_dimension_numbers<[0], [0], [1], [1], [0, 1, 1, 1], [], []>} : vector<48x16xbf16>, vector<48x32xbf16>, vector<16x32xf32> -> vector<16x32xf32>
    %36 = vector.shape_cast %35 : vector<16x32xf32> to vector<1x16x32xf32>
    %37 = arith.addf %33, %36 : vector<1x16x32xf32>
    %c0_19 = arith.constant 0 : index
    %c0_20 = arith.constant 0 : index
    %c0_21 = arith.constant 0 : index
    %38 = vector.load %arg6[%c0_19, %c0_20, %c0_21] : memref<1x16x32xf32, #tpu.memory_space<vmem>>, vector<1x16x32xf32>
    tpu.vector_store %arg6[%c0_19, %c0_20, %c0_21], %37 {strides = array<i32>} : memref<1x16x32xf32, #tpu.memory_space<vmem>>, vector<1x16x32xf32>,
    return
  }
  func.func @transform_0(%arg0: i32, %arg1: i32) -> (i32, i32) {
    %c3_i32 = arith.constant 3 : i32
    %0 = arith.muli %arg0, %c3_i32 : i32
    %1 = arith.addi %0, %arg1 : i32
    %c4_i32 = arith.constant 4 : i32
    %2 = arith.minsi %1, %c4_i32 : i32
    %c0_i32 = arith.constant 0 : i32
    %c0_i32_0 = arith.constant 0 : i32
    return %2, %c0_i32 : i32, i32
  }
  func.func @transform_1(%arg0: i32, %arg1: i32) -> (i32, i32) {
    %c3_i32 = arith.constant 3 : i32
    %0 = arith.muli %arg0, %c3_i32 : i32
    %1 = arith.addi %0, %arg1 : i32
    %c4_i32 = arith.constant 4 : i32
    %2 = arith.minsi %1, %c4_i32 : i32
    %c0_i32 = arith.constant 0 : i32
    %c0_i32_0 = arith.constant 0 : i32
    return %2, %c0_i32 : i32, i32
  }
  func.func @transform_2(%arg0: i32, %arg1: i32) -> (i32, i32) {
    %c3_i32 = arith.constant 3 : i32
    %0 = arith.muli %arg0, %c3_i32 : i32
    %1 = arith.addi %0, %arg1 : i32
    %c4_i32 = arith.constant 4 : i32
    %2 = arith.minsi %1, %c4_i32 : i32
    %c0_i32 = arith.constant 0 : i32
    %c0_i32_0 = arith.constant 0 : i32
    return %2, %c0_i32 : i32, i32
  }
  func.func @transform_3(%arg0: i32, %arg1: i32) -> (i32, i32, i32) {
    %c0_i32 = arith.constant 0 : i32
    %c0_i32_0 = arith.constant 0 : i32
    %c0_i32_1 = arith.constant 0 : i32
    return %arg0, %c0_i32, %c0_i32_0 : i32, i32, i32
  }
  func.func @transform_4(%arg0: i32, %arg1: i32) -> (i32, i32, i32) {
    %c0_i32 = arith.constant 0 : i32
    %c0_i32_0 = arith.constant 0 : i32
    %c0_i32_1 = arith.constant 0 : i32
    return %arg0, %c0_i32, %c0_i32_0 : i32, i32, i32
  }
}

</mosaic_0001>

<llo_original>
// kernel: _forward_impl.3
$region0: #{_forward_impl.3}
  #allocation0 [shape = 'u32[]', space=smem, size = 0x4, offset = 0x4, fixed_abs, tag = 'smem constant byte address 0x4 - core index']
  #allocation1 [shape = 'u32[144,128]{1,0:T(1,128)}', space=vmem, size = 0x12000, scoped, tag = 'internal scratch']
  %s0 = inlined_call_operand.vmem [shape: f32[200,32], index: 0, kind: input, shape index: {}]
  %s1 = inlined_call_operand.vmem [shape: f32[200,8], index: 1, kind: input, shape index: {}]
  %s2 = inlined_call_operand.vmem [shape: f32[200,16], index: 2, kind: input, shape index: {}]
  %s3 = inlined_call_operand.vmem [shape: bf16[32,64], index: 3, kind: input, shape index: {}]
  %s4 = inlined_call_operand.vmem [shape: bf16[8,64], index: 4, kind: input, shape index: {}]
  %s5 = inlined_call_operand.vmem [shape: bf16[16,64], index: 5, kind: input, shape index: {}]
  %s6 = inlined_call_operand.vmem [shape: f32[1,64], index: 6, kind: input, shape index: {}]
  %s7 = inlined_call_operand.vmem [shape: f32[200,64], index: 7, kind: output, shape index: {}]
  %s8 = sld [smem:[#allocation0]]
  $region109: #{_forward_impl.3} parent=0
    _
  %s10 = ssub.s32 1, %s8
  %s11 = scalar_select 0, %s10, %s8
  $region1: #{_forward_impl.3} parent=0
    #allocation2 [shape = 'u8[49152]{0}', space=vmem, size = 0xc000, scoped, tag = 'output window, operand 0']
    loop: start=0, step=1, limit=7
    $region2: #{_forward_impl.3} parent=1 // loop_pre_header
      _
    $region3: #{_forward_impl.3} parent=1 // loop_header
      %s13 = sphi 0, %s17
      %p14 = scmp.ge.s32.totalorder %s13, 7
      %s23 = sphi 0, %s25
      %s26 = sphi 0, %s23
      %s27 = sphi 0, %s26
      %s43 = sphi 0, %s27
      %s49 = sphi 0, %s51
      %s52 = sphi 0, %s49
      %s53 = sphi 0, %s52
      %s69 = sphi 0, %s53
      %s75 = sphi 0, %s77
      %s78 = sphi 0, %s75
      %s79 = sphi 0, %s78
      %s95 = sphi 0, %s79
      %s99 = sphi 0, %s99
      %s101 = sphi 0, %s99
      %s102 = sphi 0, %s101
      %s116 = sphi 0, %s102
      %s120 = sphi 0, %s120
      %s122 = sphi 0, %s120
      %s123 = sphi 0, %s122
      %s137 = sphi 0, %s123
      %s141 = sphi 0, %s141
      %s143 = sphi 0, %s141
      %s144 = sphi 0, %s143
      %s158 = sphi 0, %s144
      %s162 = sphi 0, %s162
      %s164 = sphi 0, %s162
      %s165 = sphi 0, %s164
      %s179 = sphi 0, %s165
      %s185 = sphi 0, %s187
      %s188 = sphi 0, %s185
      %s189 = sphi 0, %s188
      %s205 = sphi 0, %s189
    $region4: #{_forward_impl.3} parent=1 // loop_header_branch
      %16 = sbr.rel (%p14) target = $region8
    $region5: #{_forward_impl.3} parent=1 // loop_body
      %s18 = ssub.s32 %s13, 1
      %s19 = ssub.s32 %s13, 2
      %s20 = sadd.s32 %s13, 1
      %s21 = ssub.s32 %s13, %s20
      %p22 = scmp.eq.s32.totalorder %s21, 0
      %s24 = sadd.s32 %s23, 1
      %s25 = scalar_select %p22, %s23, %s24
      %p28 = pneg %p22
      %p29 = scmp.eq.s32.totalorder %s13, 4
      %p30 = por %p28, %p29
      %p31 = scmp.ne.s32.totalorder %s23, %s26
      %p32 = scmp.eq.s32.totalorder %s13, 0
      %p33 = por %p31, %p32
      %p34 = scmp.ne.s32.totalorder %s23, %s26
      %p35 = scmp.eq.s32.totalorder %s18, 4
      %p36 = por %p34, %p35
      %p37 = scmp.ne.s32.totalorder %s26, %s27
      %p38 = scmp.eq.s32.totalorder %s18, 0
      %p39 = por %p37, %p38
      %p40 = scmp.ne.s32.totalorder %s26, %s27
      %p41 = scmp.eq.s32.totalorder %s19, 4
      %p42 = por %p40, %p41
      %p44 = scmp.ne.s32.totalorder %s27, %s43
      %p45 = scmp.eq.s32.totalorder %s19, 0
      %p46 = por %p44, %p45
      %s47 = ssub.s32 %s13, %s20
      %p48 = scmp.eq.s32.totalorder %s47, 0
      %s50 = sadd.s32 %s49, 1
      %s51 = scalar_select %p48, %s49, %s50
      %p54 = pneg %p48
      %p55 = scmp.eq.s32.totalorder %s13, 4
      %p56 = por %p54, %p55
      %p57 = scmp.ne.s32.totalorder %s49, %s52
      %p58 = scmp.eq.s32.totalorder %s13, 0
      %p59 = por %p57, %p58
      %p60 = scmp.ne.s32.totalorder %s49, %s52
      %p61 = scmp.eq.s32.totalorder %s18, 4
      %p62 = por %p60, %p61
      %p63 = scmp.ne.s32.totalorder %s52, %s53
      %p64 = scmp.eq.s32.totalorder %s18, 0
      %p65 = por %p63, %p64
      %p66 = scmp.ne.s32.totalorder %s52, %s53
      %p67 = scmp.eq.s32.totalorder %s19, 4
      %p68 = por %p66, %p67
      %p70 = scmp.ne.s32.totalorder %s53, %s69
      %p71 = scmp.eq.s32.totalorder %s19, 0
      %p72 = por %p70, %p71
      %s73 = ssub.s32 %s13, %s20
      %p74 = scmp.eq.s32.totalorder %s73, 0
      %s76 = sadd.s32 %s75, 1
      %s77 = scalar_select %p74, %s75, %s76
      %p80 = pneg %p74
      %p81 = scmp.eq.s32.totalorder %s13, 4
      %p82 = por %p80, %p81
      %p83 = scmp.ne.s32.totalorder %s75, %s78
      %p84 = scmp.eq.s32.totalorder %s13, 0
      %p85 = por %p83, %p84
      %p86 = scmp.ne.s32.totalorder %s75, %s78
      %p87 = scmp.eq.s32.totalorder %s18, 4
      %p88 = por %p86, %p87
      %p89 = scmp.ne.s32.totalorder %s78, %s79
      %p90 = scmp.eq.s32.totalorder %s18, 0
      %p91 = por %p89, %p90
      %p92 = scmp.ne.s32.totalorder %s78, %s79
      %p93 = scmp.eq.s32.totalorder %s19, 4
      %p94 = por %p92, %p93
      %p96 = scmp.ne.s32.totalorder %s79, %s95
      %p97 = scmp.eq.s32.totalorder %s19, 0
      %p98 = por %p96, %p97
      %s100 = sadd.s32 %s99, 1
      %p103 = scmp.eq.s32.totalorder %s13, 4
      %p104 = scmp.ne.s32.totalorder %s99, %s101
      %p105 = scmp.eq.s32.totalorder %s13, 0
      %p106 = por %p104, %p105
      %p107 = scmp.ne.s32.totalorder %s99, %s101
      %p108 = scmp.eq.s32.totalorder %s18, 4
      %p109 = por %p107, %p108
      %p110 = scmp.ne.s32.totalorder %s101, %s102
      %p111 = scmp.eq.s32.totalorder %s18, 0
      %p112 = por %p110, %p111
      %p113 = scmp.ne.s32.totalorder %s101, %s102
      %p114 = scmp.eq.s32.totalorder %s19, 4
      %p115 = por %p113, %p114
      %p117 = scmp.ne.s32.totalorder %s102, %s116
      %p118 = scmp.eq.s32.totalorder %s19, 0
      %p119 = por %p117, %p118
      %s121 = sadd.s32 %s120, 1
      %p124 = scmp.eq.s32.totalorder %s13, 4
      %p125 = scmp.ne.s32.totalorder %s120, %s122
      %p126 = scmp.eq.s32.totalorder %s13, 0
      %p127 = por %p125, %p126
      %p128 = scmp.ne.s32.totalorder %s120, %s122
      %p129 = scmp.eq.s32.totalorder %s18, 4
      %p130 = por %p128, %p129
      %p131 = scmp.ne.s32.totalorder %s122, %s123
      %p132 = scmp.eq.s32.totalorder %s18, 0
      %p133 = por %p131, %p132
      %p134 = scmp.ne.s32.totalorder %s122, %s123
      %p135 = scmp.eq.s32.totalorder %s19, 4
      %p136 = por %p134, %p135
      %p138 = scmp.ne.s32.totalorder %s123, %s137
      %p139 = scmp.eq.s32.totalorder %s19, 0
      %p140 = por %p138, %p139
      %s142 = sadd.s32 %s141, 1
      %p145 = scmp.eq.s32.totalorder %s13, 4
      %p146 = scmp.ne.s32.totalorder %s141, %s143
      %p147 = scmp.eq.s32.totalorder %s13, 0
      %p148 = por %p146, %p147
      %p149 = scmp.ne.s32.totalorder %s141, %s143
      %p150 = scmp.eq.s32.totalorder %s18, 4
      %p151 = por %p149, %p150
      %p152 = scmp.ne.s32.totalorder %s143, %s144
      %p153 = scmp.eq.s32.totalorder %s18, 0
      %p154 = por %p152, %p153
      %p155 = scmp.ne.s32.totalorder %s143, %s144
      %p156 = scmp.eq.s32.totalorder %s19, 4
      %p157 = por %p155, %p156
      %p159 = scmp.ne.s32.totalorder %s144, %s158
      %p160 = scmp.eq.s32.totalorder %s19, 0
      %p161 = por %p159, %p160
      %s163 = sadd.s32 %s162, 1
      %p166 = scmp.eq.s32.totalorder %s13, 4
      %p167 = scmp.ne.s32.totalorder %s162, %s164
      %p168 = scmp.eq.s32.totalorder %s13, 0
      %p169 = por %p167, %p168
      %p170 = scmp.ne.s32.totalorder %s162, %s164
      %p171 = scmp.eq.s32.totalorder %s18, 4
      %p172 = por %p170, %p171
      %p173 = scmp.ne.s32.totalorder %s164, %s165
      %p174 = scmp.eq.s32.totalorder %s18, 0
      %p175 = por %p173, %p174
      %p176 = scmp.ne.s32.totalorder %s164, %s165
      %p177 = scmp.eq.s32.totalorder %s19, 4
      %p178 = por %p176, %p177
      %p180 = scmp.ne.s32.totalorder %s165, %s179
      %p181 = scmp.eq.s32.totalorder %s19, 0
      %p182 = por %p180, %p181
      %s183 = ssub.s32 %s13, %s20
      %p184 = scmp.eq.s32.totalorder %s183, 0
      %s186 = sadd.s32 %s185, 1
      %s187 = scalar_select %p184, %s185, %s186
      %p190 = pneg %p184
      %p191 = scmp.eq.s32.totalorder %s13, 4
      %p192 = por %p190, %p191
      %p193 = scmp.ne.s32.totalorder %s185, %s188
      %p194 = scmp.eq.s32.totalorder %s13, 0
      %p195 = por %p193, %p194
      %p196 = scmp.ne.s32.totalorder %s185, %s188
      %p197 = scmp.eq.s32.totalorder %s18, 4
      %p198 = por %p196, %p197
      %p199 = scmp.ne.s32.totalorder %s188, %s189
      %p200 = scmp.eq.s32.totalorder %s18, 0
      %p201 = por %p199, %p200
      %p202 = scmp.ne.s32.totalorder %s188, %s189
      %p203 = scmp.eq.s32.totalorder %s19, 4
      %p204 = por %p202, %p203
      %p206 = scmp.ne.s32.totalorder %s189, %s205
      %p207 = scmp.eq.s32.totalorder %s19, 0
      %p208 = por %p206, %p207
      %p209 = scmp.le.s32.totalorder 1, %s13
      %p210 = scmp.lt.s32.totalorder %s13, 6
      %p211 = pnand %p209, %p210
      %p212 = pneg %p211
      // Predicated region
      $region9: #{_forward_impl.3} parent=5 // pred_check
        _
      $region10: #{_forward_impl.3} parent=5 // pred_check_branch
        %214 = sbr.rel (%p211) target = $region12
      $region11: #{_forward_impl.3} parent=5 // pred_region
        %s215 = ssub.s32 %s13, 1
        // Predicated region
        $region13: #{_forward_impl.3} parent=11 // pred_check
          %p216 = pneg %p112
        $region14: #{_forward_impl.3} parent=11 // pred_check_branch
          %218 = sbr.rel (%p216) target = $region16
        $region15: #{_forward_impl.3} parent=11 // pred_region
          _
        $region16: #{_forward_impl.3} parent=11 // pred_fallthru
          _
        // Predicated region
        $region17: #{_forward_impl.3} parent=11 // pred_check
          %p219 = pneg %p133
        $region18: #{_forward_impl.3} parent=11 // pred_check_branch
          %221 = sbr.rel (%p219) target = $region20
        $region19: #{_forward_impl.3} parent=11 // pred_region
          _
        $region20: #{_forward_impl.3} parent=11 // pred_fallthru
          _
        // Predicated region
        $region21: #{_forward_impl.3} parent=11 // pred_check
          %p222 = pneg %p154
        $region22: #{_forward_impl.3} parent=11 // pred_check_branch
          %224 = sbr.rel (%p222) target = $region24
        $region23: #{_forward_impl.3} parent=11 // pred_region
          _
        $region24: #{_forward_impl.3} parent=11 // pred_fallthru
          _
        // Predicated region
        $region25: #{_forward_impl.3} parent=11 // pred_check
          %p225 = pneg %p175
        $region26: #{_forward_impl.3} parent=11 // pred_check_branch
          %227 = sbr.rel (%p225) target = $region28
        $region27: #{_forward_impl.3} parent=11 // pred_region
          _
        $region28: #{_forward_impl.3} parent=11 // pred_fallthru
          _
      $region12: #{_forward_impl.3} parent=5 // pred_fallthru
        _
      %p228 = scmp.lt.s32.totalorder %s13, 5
      // Predicated region
      $region29: #{_forward_impl.3} parent=5 // pred_check
        %p229 = pneg %p228
      $region30: #{_forward_impl.3} parent=5 // pred_check_branch
        %231 = sbr.rel (%p229) target = $region32
      $region31: #{_forward_impl.3} parent=5 // pred_region
        // Predicated region
        $region33: #{_forward_impl.3} parent=31 // pred_check
          %p232 = pneg %p33
        $region34: #{_forward_impl.3} parent=31 // pred_check_branch
          %234 = sbr.rel (%p232) target = $region36
        $region35: #{_forward_impl.3} parent=31 // pred_region
          %s235 = smul.u32 6, %s13
          %s236 = ssub.s32 25, %s235
          %p237 = scmp.lt.s32.totalorder %s236, 6
          %s238 = scalar_select %p237, %s236, 6
          %s239 = smul.u32 128, %s238
          %p240 = scmp.lt.s32.totalorder %s235, 24
          %s241 = scalar_select %p240, %s235, 24
          %s242 = smul.addr %s241, 8
          %s243 = scalar_lea.vmem %s0, %s242
          %s244 = smul.u32 6, %s13
          %s245 = ssub.s32 25, %s244
          %p246 = scmp.lt.s32.totalorder %s245, 6
          %s247 = scalar_select %p246, %s245, 6
          %s248 = smul.u32 128, %s247
        $region36: #{_forward_impl.3} parent=31 // pred_fallthru
          _
        // Predicated region
        $region37: #{_forward_impl.3} parent=31 // pred_check
          %p249 = pneg %p59
        $region38: #{_forward_impl.3} parent=31 // pred_check_branch
          %251 = sbr.rel (%p249) target = $region40
        $region39: #{_forward_impl.3} parent=31 // pred_region
          %s252 = smul.u32 6, %s13
          %s253 = ssub.s32 25, %s252
          %p254 = scmp.lt.s32.totalorder %s253, 6
          %s255 = scalar_select %p254, %s253, 6
          %s256 = smul.u32 128, %s255
          %p257 = scmp.lt.s32.totalorder %s252, 24
          %s258 = scalar_select %p257, %s252, 24
          %s259 = smul.addr %s258, 8
          %s260 = scalar_lea.vmem %s1, %s259
          %s261 = smul.u32 6, %s13
          %s262 = ssub.s32 25, %s261
          %p263 = scmp.lt.s32.totalorder %s262, 6
          %s264 = scalar_select %p263, %s262, 6
          %s265 = smul.u32 128, %s264
        $region40: #{_forward_impl.3} parent=31 // pred_fallthru
          _
        // Predicated region
        $region41: #{_forward_impl.3} parent=31 // pred_check
          %p266 = pneg %p85
        $region42: #{_forward_impl.3} parent=31 // pred_check_branch
          %268 = sbr.rel (%p266) target = $region44
        $region43: #{_forward_impl.3} parent=31 // pred_region
          %s269 = smul.u32 6, %s13
          %s270 = ssub.s32 25, %s269
          %p271 = scmp.lt.s32.totalorder %s270, 6
          %s272 = scalar_select %p271, %s270, 6
          %s273 = smul.u32 128, %s272
          %p274 = scmp.lt.s32.totalorder %s269, 24
          %s275 = scalar_select %p274, %s269, 24
          %s276 = smul.addr %s275, 8
          %s277 = scalar_lea.vmem %s2, %s276
          %s278 = smul.u32 6, %s13
          %s279 = ssub.s32 25, %s278
          %p280 = scmp.lt.s32.totalorder %s279, 6
          %s281 = scalar_select %p280, %s279, 6
          %s282 = smul.u32 128, %s281
        $region44: #{_forward_impl.3} parent=31 // pred_fallthru
          _
      $region32: #{_forward_impl.3} parent=5 // pred_fallthru
        _
      %p283 = scmp.le.s32.totalorder 1, %s13
      %p284 = scmp.lt.s32.totalorder %s13, 6
      %p285 = pnand %p283, %p284
      %p286 = pneg %p285
      // Predicated region
      $region45: #{_forward_impl.3} parent=5 // pred_check
        _
      $region46: #{_forward_impl.3} parent=5 // pred_check_branch
        %288 = sbr.rel (%p285) target = $region48
      $region47: #{_forward_impl.3} parent=5 // pred_region
        %s289 = ssub.s32 %s13, 1
        %s290 = smul.u32 6, %s18
        %s291 = ssub.s32 25, %s290
        %p292 = scmp.lt.s32.totalorder %s291, 6
        %s293 = scalar_select %p292, %s291, 6
        %s294 = smul.u32 128, %s293
        %p295 = scmp.lt.s32.totalorder %s290, 24
        %s296 = scalar_select %p295, %s290, 24
        %s297 = smul.addr %s296, 8
        %s298 = scalar_lea.vmem %s0, %s297
        %p299 = pneg %p39
        %p300 = pneg %p36
        %s301 = smul.u32 6, %s18
        %s302 = ssub.s32 25, %s301
        %p303 = scmp.lt.s32.totalorder %s302, 6
        %s304 = scalar_select %p303, %s302, 6
        %s305 = smul.u32 128, %s304
        %p306 = scmp.lt.s32.totalorder %s301, 24
        %s307 = scalar_select %p306, %s301, 24
        %s308 = smul.addr %s307, 8
        %s309 = scalar_lea.vmem %s1, %s308
        %p310 = pneg %p65
        %p311 = pneg %p62
        %s312 = smul.u32 6, %s18
        %s313 = ssub.s32 25, %s312
        %p314 = scmp.lt.s32.totalorder %s313, 6
        %s315 = scalar_select %p314, %s313, 6
        %s316 = smul.u32 128, %s315
        %p317 = scmp.lt.s32.totalorder %s312, 24
        %s318 = scalar_select %p317, %s312, 24
        %s319 = smul.addr %s318, 8
        %s320 = scalar_lea.vmem %s2, %s319
        %p321 = pneg %p91
        %p322 = pneg %p88
        %p323 = pneg %p112
        %p324 = pneg %p109
        %p325 = pneg %p133
        %p326 = pneg %p130
        %p327 = pneg %p154
        %p328 = pneg %p151
        %p329 = pneg %p175
        %p330 = pneg %p172
        %p331 = pneg %p201
        %p332 = pneg %p198
        %s333 = sand.u32 %s188, 1
        %s334 = sand.u32 %s188, 1
        %s335 = smul.addr %s334, 48
        %s336 = scalar_lea.vmem [#allocation2], %s335
        %s337 = smul.u32 6, %s18
        %s338 = ssub.s32 25, %s337
        %p339 = scmp.lt.s32.totalorder %s338, 6
        %s340 = scalar_select %p339, %s338, 6
        %s341 = smul.u32 128, %s340
        %p342 = scmp.lt.s32.totalorder %s337, 24
        %s343 = scalar_select %p342, %s337, 24
        %s344 = smul.addr %s343, 8
        %s345 = scalar_lea.vmem %s0, %s344
        %s346 = smul.u32 6, %s18
        %s347 = ssub.s32 25, %s346
        %p348 = scmp.lt.s32.totalorder %s347, 6
        %s349 = scalar_select %p348, %s347, 6
        %s350 = smul.u32 128, %s349
        %s351 = smul.u32 6, %s18
        %s352 = ssub.s32 25, %s351
        %p353 = scmp.lt.s32.totalorder %s352, 6
        %s354 = scalar_select %p353, %s352, 6
        %s355 = smul.u32 128, %s354
        %p356 = scmp.lt.s32.totalorder %s351, 24
        %s357 = scalar_select %p356, %s351, 24
        %s358 = smul.addr %s357, 8
        %s359 = scalar_lea.vmem %s1, %s358
        %s360 = smul.u32 6, %s18
        %s361 = ssub.s32 25, %s360
        %p362 = scmp.lt.s32.totalorder %s361, 6
        %s363 = scalar_select %p362, %s361, 6
        %s364 = smul.u32 128, %s363
        %s365 = smul.u32 6, %s18
        %s366 = ssub.s32 25, %s365
        %p367 = scmp.lt.s32.totalorder %s366, 6
        %s368 = scalar_select %p367, %s366, 6
        %s369 = smul.u32 128, %s368
        %p370 = scmp.lt.s32.totalorder %s365, 24
        %s371 = scalar_select %p370, %s365, 24
        %s372 = smul.addr %s371, 8
        %s373 = scalar_lea.vmem %s2, %s372
        %s374 = smul.u32 6, %s18
        %s375 = ssub.s32 25, %s374
        %p376 = scmp.lt.s32.totalorder %s375, 6
        %s377 = scalar_select %p376, %s375, 6
        %s378 = smul.u32 128, %s377
        %s379 = smul.u32 6, %s18
        %s380 = ssub.s32 25, %s379
        %p381 = scmp.lt.s32.totalorder %s380, 6
        %s382 = scalar_select %p381, %s380, 6
        %s383 = smul.u32 128, %s382
        %v385 = vld [vmem:[%s345] sm:$0xff]
        %v386 = vld [vmem:[%s345 + $0x8] sm:$0xff]
        %v387 = vld [vmem:[%s345 + $0x10] sm:$0xff]
        %v388 = vld [vmem:[%s345 + $0x18] sm:$0xff]
        %v389 = vld [vmem:[%s345 + $0x20] sm:$0xff]
        %v390 = vld [vmem:[%s345 + $0x28] sm:$0xff]
        %v391 = vpack.c.bf16 %v386, %v385
        %v392 = vpack.c.bf16 %v388, %v387
        %v393 = vpack.c.bf16 %v390, %v389
        %v394 = vld [vmem:[%s3] sm:$0xf]
        %v395 = vld [vmem:[%s3 + $0x4] sm:$0xf]
        %v396 = vld [vmem:[%s3 + $0x8] sm:$0xf]
        %v397 = vld [vmem:[%s3 + $0xc] sm:$0xf]
        %v398 = vld [vmem:[%s359] sm:$0xff]
        %v399 = vld [vmem:[%s359 + $0x8] sm:$0xff]
        %v400 = vld [vmem:[%s359 + $0x10] sm:$0xff]
        %v401 = vld [vmem:[%s359 + $0x18] sm:$0xff]
        %v402 = vld [vmem:[%s359 + $0x20] sm:$0xff]
        %v403 = vld [vmem:[%s359 + $0x28] sm:$0xff]
        %v404 = vpack.c.bf16 %v399, %v398
        %v405 = vpack.c.bf16 %v401, %v400
        %v406 = vpack.c.bf16 %v403, %v402
        %v407 = vld [vmem:[%s4] sm:$0xf]
        %vm408 = vcmask 64512
        %v410 = vsel %vm408, %v404, 0
        %v413 = vsel %vm408, %v405, 0
        %v416 = vsel %vm408, %v406, 0
        %vm418 = vcmask 1043456
        %v420 = vsel %vm418, %v407, 0
        %422 = vmatprep.subr.bf16.mxu0 0
        %423 = vmatpush1.bf16.msra.mxu0 0
        %424 = vmatprep.subr.bf16.mxu0 0
        %425 = vmatpush1.bf16.msra.mxu0 0
        %426 = vmatprep.subr.bf16.mxu0 0
        %427 = vmatpush1.bf16.msra.mxu0 0
        %428 = vmatprep.subr.bf16.mxu0 0
        %429 = vmatpush1.bf16.msra.mxu0 0
        %430 = vmatprep.subr.bf16.mxu0 0
        %431 = vmatpush1.bf16.msra.mxu0 0
        %432 = vmatprep.subr.bf16.mxu0 0
        %433 = vmatpush1.bf16.msra.mxu0 0
        %434 = vmatprep.subr.bf16.mxu0 0
        %435 = vmatpush1.bf16.msra.mxu0 0
        %436 = vmatprep.subr.bf16.mxu0 0
        %437 = vmatpush1.bf16.msra.mxu0 %v420
        %438 = vmatprep.subr.bf16.mxu0 0
        %439 = vmatpush2.bf16.msra.mxu0 0
        %440 = vmatprep.subr.bf16.mxu0 0
        %441 = vmatpush2.bf16.msra.mxu0 0
        %442 = vmatprep.subr.bf16.mxu0 0
        %443 = vmatpush2.bf16.msra.mxu0 0
        %444 = vmatprep.subr.bf16.mxu0 0
        %445 = vmatpush2.bf16.msra.mxu0 0
        %446 = vmatprep.subr.bf16.mxu0 0
        %447 = vmatpush2.bf16.msra.mxu0 0
        %448 = vmatprep.subr.bf16.mxu0 0
        %449 = vmatpush2.bf16.msra.mxu0 0
        %450 = vmatprep.subr.bf16.mxu0 0
        %451 = vmatpush2.bf16.msra.mxu0 0
        %452 = vmatprep.subr.bf16.mxu0 0
        %453 = vmatpush2.bf16.msra.mxu0 0
        %454 = vmatprep.mubr.bf16.mxu0 0
        %455 = vmatmul.mubr.bf16.gmra.mxu0 %v410
        %v456 = vpop.f32.mrf.mxu0
        %v457 = vadd.f32 0.0, %v456
        %v458 = vpop.f32.mrf.mxu0
        %v459 = vpop.f32.mrf.mxu0
        %v460 = vadd.f32 0.0, %v459
        %v461 = vpop.f32.mrf.mxu0
        %462 = vmatprep.mubr.bf16.mxu0 0
        %463 = vmatmul.mubr.bf16.gmra.mxu0 %v413
        %v464 = vpop.f32.mrf.mxu0
        %v465 = vadd.f32 0.0, %v464
        %v466 = vpop.f32.mrf.mxu0
        %v467 = vpop.f32.mrf.mxu0
        %v468 = vadd.f32 0.0, %v467
        %v469 = vpop.f32.mrf.mxu0
        %470 = vmatprep.mubr.bf16.mxu0 0
        %471 = vmatmul.mubr.bf16.gmra.mxu0 %v416
        %v472 = vpop.f32.mrf.mxu0
        %v473 = vadd.f32 0.0, %v472
        %v474 = vpop.f32.mrf.mxu0
        %v475 = vpop.f32.mrf.mxu0
        %v476 = vadd.f32 0.0, %v475
        %v477 = vpop.f32.mrf.mxu0
        %478 = vdwg.mxu0
        %v483 = vunpack.c.l.b16 %v394
        %v484 = vunpack.c.l.b16 %v395
        %v485 = vunpack.c.l.b16 %v396
        %v486 = vunpack.c.l.b16 %v397
        %v487 = vpack.c.b16 %v484, %v483
        %v488 = vpack.c.b16 %v486, %v485
        %vm491 = vcmask 261120
        %v493 = vsel %vm491, %v391, 0
        %v496 = vsel %vm491, %v392, 0
        %v499 = vsel %vm491, %v393, 0
        %501 = vmatprep.subr.bf16.mxu0 0
        %502 = vmatpush1.bf16.msra.mxu0 0
        %503 = vmatprep.subr.bf16.mxu0 0
        %504 = vmatpush1.bf16.msra.mxu0 0
        %505 = vmatprep.subr.bf16.mxu0 0
        %506 = vmatpush1.bf16.msra.mxu0 0
        %507 = vmatprep.subr.bf16.mxu0 0
        %508 = vmatpush1.bf16.msra.mxu0 0
        %509 = vmatprep.subr.bf16.mxu0 0
        %510 = vmatpush1.bf16.msra.mxu0 0
        %511 = vmatprep.subr.bf16.mxu0 0
        %512 = vmatpush1.bf16.msra.mxu0 0
        %513 = vmatprep.subr.bf16.mxu0 0
        %514 = vmatpush1.bf16.msra.mxu0 %v488
        %515 = vmatprep.subr.bf16.mxu0 0
        %516 = vmatpush1.bf16.msra.mxu0 %v487
        %517 = vmatprep.subr.bf16.mxu0 0
        %518 = vmatpush2.bf16.msra.mxu0 0
        %519 = vmatprep.subr.bf16.mxu0 0
        %520 = vmatpush2.bf16.msra.mxu0 0
        %521 = vmatprep.subr.bf16.mxu0 0
        %522 = vmatpush2.bf16.msra.mxu0 0
        %523 = vmatprep.subr.bf16.mxu0 0
        %524 = vmatpush2.bf16.msra.mxu0 0
        %525 = vmatprep.subr.bf16.mxu0 0
        %526 = vmatpush2.bf16.msra.mxu0 0
        %527 = vmatprep.subr.bf16.mxu0 0
        %528 = vmatpush2.bf16.msra.mxu0 0
        %529 = vmatprep.subr.bf16.mxu0 0
        %530 = vmatpush2.bf16.msra.mxu0 0
        %531 = vmatprep.subr.bf16.mxu0 0
        %532 = vmatpush2.bf16.msra.mxu0 0
        %533 = vmatprep.mubr.bf16.mxu0 0
        %534 = vmatmul.mubr.bf16.gmra.mxu0 %v493
        %v535 = vpop.f32.mrf.mxu0
        %v536 = vadd.f32 %v457, %v535
        %v537 = vpop.f32.mrf.mxu0
        %v538 = vpop.f32.mrf.mxu0
        %v539 = vadd.f32 %v460, %v538
        %v540 = vpop.f32.mrf.mxu0
        %541 = vmatprep.mubr.bf16.mxu0 0
        %542 = vmatmul.mubr.bf16.gmra.mxu0 %v496
        %v543 = vpop.f32.mrf.mxu0
        %v544 = vadd.f32 %v465, %v543
        %v545 = vpop.f32.mrf.mxu0
        %v546 = vpop.f32.mrf.mxu0
        %v547 = vadd.f32 %v468, %v546
        %v548 = vpop.f32.mrf.mxu0
        %549 = vmatprep.mubr.bf16.mxu0 0
        %550 = vmatmul.mubr.bf16.gmra.mxu0 %v499
        %v551 = vpop.f32.mrf.mxu0
        %v552 = vadd.f32 %v473, %v551
        %v553 = vpop.f32.mrf.mxu0
        %v554 = vpop.f32.mrf.mxu0
        %v555 = vadd.f32 %v476, %v554
        %v556 = vpop.f32.mrf.mxu0
        %557 = vdwg.mxu0
        %v558 = vld [vmem:[%s373] sm:$0xff]
        %v559 = vld [vmem:[%s373 + $0x8] sm:$0xff]
        %v560 = vld [vmem:[%s373 + $0x10] sm:$0xff]
        %v561 = vld [vmem:[%s373 + $0x18] sm:$0xff]
        %v562 = vld [vmem:[%s373 + $0x20] sm:$0xff]
        %v563 = vld [vmem:[%s373 + $0x28] sm:$0xff]
        %v564 = vpack.c.bf16 %v559, %v558
        %v565 = vpack.c.bf16 %v561, %v560
        %v566 = vpack.c.bf16 %v563, %v562
        %v567 = vld [vmem:[%s5] sm:$0xf]
        %v568 = vld [vmem:[%s5 + $0x4] sm:$0xf]
        %v571 = vunpack.c.l.b16 %v567
        %v572 = vunpack.c.l.b16 %v568
        %v573 = vpack.c.b16 %v572, %v571
        %vm575 = vcmask 130048
        %v577 = vsel %vm575, %v564, 0
        %v580 = vsel %vm575, %v565, 0
        %v583 = vsel %vm575, %v566, 0
        %585 = vmatprep.subr.bf16.mxu0 0
        %586 = vmatpush1.bf16.msra.mxu0 0
        %587 = vmatprep.subr.bf16.mxu0 0
        %588 = vmatpush1.bf16.msra.mxu0 0
        %589 = vmatprep.subr.bf16.mxu0 0
        %590 = vmatpush1.bf16.msra.mxu0 0
        %591 = vmatprep.subr.bf16.mxu0 0
        %592 = vmatpush1.bf16.msra.mxu0 0
        %593 = vmatprep.subr.bf16.mxu0 0
        %594 = vmatpush1.bf16.msra.mxu0 0
        %595 = vmatprep.subr.bf16.mxu0 0
        %596 = vmatpush1.bf16.msra.mxu0 0
        %597 = vmatprep.subr.bf16.mxu0 0
        %598 = vmatpush1.bf16.msra.mxu0 0
        %599 = vmatprep.subr.bf16.mxu0 0
        %600 = vmatpush1.bf16.msra.mxu0 %v573
        %601 = vmatprep.subr.bf16.mxu0 0
        %602 = vmatpush2.bf16.msra.mxu0 0
        %603 = vmatprep.subr.bf16.mxu0 0
        %604 = vmatpush2.bf16.msra.mxu0 0
        %605 = vmatprep.subr.bf16.mxu0 0
        %606 = vmatpush2.bf16.msra.mxu0 0
        %607 = vmatprep.subr.bf16.mxu0 0
        %608 = vmatpush2.bf16.msra.mxu0 0
        %609 = vmatprep.subr.bf16.mxu0 0
        %610 = vmatpush2.bf16.msra.mxu0 0
        %611 = vmatprep.subr.bf16.mxu0 0
        %612 = vmatpush2.bf16.msra.mxu0 0
        %613 = vmatprep.subr.bf16.mxu0 0
        %614 = vmatpush2.bf16.msra.mxu0 0
        %615 = vmatprep.subr.bf16.mxu0 0
        %616 = vmatpush2.bf16.msra.mxu0 0
        %617 = vmatprep.mubr.bf16.mxu0 0
        %618 = vmatmul.mubr.bf16.gmra.mxu0 %v577
        %v619 = vpop.f32.mrf.mxu0
        %v620 = vadd.f32 0.0, %v619
        %v621 = vpop.f32.mrf.mxu0
        %v622 = vpop.f32.mrf.mxu0
        %v623 = vadd.f32 0.0, %v622
        %v624 = vpop.f32.mrf.mxu0
        %625 = vmatprep.mubr.bf16.mxu0 0
        %626 = vmatmul.mubr.bf16.gmra.mxu0 %v580
        %v627 = vpop.f32.mrf.mxu0
        %v628 = vadd.f32 0.0, %v627
        %v629 = vpop.f32.mrf.mxu0
        %v630 = vpop.f32.mrf.mxu0
        %v631 = vadd.f32 0.0, %v630
        %v632 = vpop.f32.mrf.mxu0
        %633 = vmatprep.mubr.bf16.mxu0 0
        %634 = vmatmul.mubr.bf16.gmra.mxu0 %v583
        %v635 = vpop.f32.mrf.mxu0
        %v636 = vadd.f32 0.0, %v635
        %v637 = vpop.f32.mrf.mxu0
        %v638 = vpop.f32.mrf.mxu0
        %v639 = vadd.f32 0.0, %v638
        %v640 = vpop.f32.mrf.mxu0
        %641 = vdwg.mxu0
        %v642 = vadd.f32 %v536, %v620
        %v643 = vadd.f32 %v539, %v623
        %v644 = vadd.f32 %v544, %v628
        %v645 = vadd.f32 %v547, %v631
        %v646 = vadd.f32 %v552, %v636
        %v647 = vadd.f32 %v555, %v639
        %v648 = vld [vmem:[%s6] sm:$0x1]
        %v650 = vlaneseq
        %v651 = vshrl.u32 %v650, 7
        %v652 = vsub.s32 0, %v651
        %v653 = vrot.slane %v648, %v652
        %v655 = vadd.f32 %v642, %v653
        %v656 = vadd.f32 %v643, %v653
        %v657 = vadd.f32 %v644, %v653
        %v658 = vadd.f32 %v645, %v653
        %v659 = vadd.f32 %v646, %v653
        %v660 = vadd.f32 %v647, %v653
        %vm661 = vcmask 523264
        %662 = vst.msk [vmem:[%s336] sm:$0xff] %vm661, %v655
        %663 = vst.msk [vmem:[%s336 + $0x8] sm:$0xff] %vm661, %v656
        %664 = vst.msk [vmem:[%s336 + $0x10] sm:$0xff] %vm661, %v657
        %665 = vst.msk [vmem:[%s336 + $0x18] sm:$0xff] %vm661, %v658
        %666 = vst.msk [vmem:[%s336 + $0x20] sm:$0xff] %vm661, %v659
        %667 = vst.msk [vmem:[%s336 + $0x28] sm:$0xff] %vm661, %v660
        %s668 = sand.u32 %s188, 1
        %s669 = sand.u32 %s188, 1
        %s670 = smul.addr %s669, 48
        %s671 = scalar_lea.vmem [#allocation2], %s670
        // Predicated region
        $region49: #{_forward_impl.3} parent=47 // pred_check
          %p672 = pneg %p198
        $region50: #{_forward_impl.3} parent=47 // pred_check_branch
          %674 = sbr.rel (%p672) target = $region52
        $region51: #{_forward_impl.3} parent=47 // pred_region
          %s675 = smul.u32 6, %s18
          %s676 = ssub.s32 25, %s675
          %p677 = scmp.lt.s32.totalorder %s676, 6
          %s678 = scalar_select %p677, %s676, 6
          %s679 = smul.u32 128, %s678
          %p680 = scmp.ne.s32.totalorder 0, %s679
          %s681 = smul.addr %s675, 8
          %s682 = scalar_lea.vmem %s7, %s681
          // Predicated region
          $region53: #{_forward_impl.3} parent=51 // pred_check
            %p683 = pneg %p680
          $region54: #{_forward_impl.3} parent=51 // pred_check_branch
            %685 = sbr.rel (%p683) target = $region56
          $region55: #{_forward_impl.3} parent=51 // pred_region
            // Predicated region
            $region57: #{_forward_impl.3} parent=55 // pred_check
              _
            $region58: #{_forward_impl.3} parent=55 // pred_check_branch
              %687 = sbr.rel (0) target = $region60
            $region59: #{_forward_impl.3} parent=55 // pred_region
              // Predicated region
              $region79: #{_forward_impl.3} parent=59 // pred_check
                _
              $region80: #{_forward_impl.3} parent=59 // pred_check_branch
                %748 = sbr.rel (0) target = $region82
              $region81: #{_forward_impl.3} parent=59 // pred_region
                %s749 = sdiv.u32.pop %s678, 6
                %s750 = srem.u32.pop %s678, 6
                // While loop
                $region83: #{_forward_impl.3} parent=81 // loop_pre_header
                  _
                $region84: #{_forward_impl.3} parent=81 // loop_header
                  %s752 = sphi 0, %s754
                  %p753 = scmp.ge.s32.totalorder %s752, %s749
                  %s757 = sphi 0, %s774
                  %s758 = sphi %s671, %s777
                  %s759 = sphi %s682, %s778
                $region85: #{_forward_impl.3} parent=81 // loop_header_branch
                  %756 = sbr.rel (%p753) target = $region89
                $region86: #{_forward_impl.3} parent=81 // loop_body
                  %v760 = vld [vmem:[%s758] sm:$0xff]
                  %761 = vst [vmem:[%s759] sm:$0xff] %v760
                  %v762 = vld [vmem:[%s758 + $0x8] sm:$0xff]
                  %763 = vst [vmem:[%s759 + $0x8] sm:$0xff] %v762
                  %v764 = vld [vmem:[%s758 + $0x10] sm:$0xff]
                  %765 = vst [vmem:[%s759 + $0x10] sm:$0xff] %v764
                  %v766 = vld [vmem:[%s758 + $0x18] sm:$0xff]
                  %767 = vst [vmem:[%s759 + $0x18] sm:$0xff] %v766
                  %v768 = vld [vmem:[%s758 + $0x20] sm:$0xff]
                  %769 = vst [vmem:[%s759 + $0x20] sm:$0xff] %v768
                  %v770 = vld [vmem:[%s758 + $0x28] sm:$0xff]
                  %771 = vst [vmem:[%s759 + $0x28] sm:$0xff] %v770
                  %s772 = sadd.s32 1, %s757
                  %p773 = scmp.ge.s32.totalorder %s772, %s749
                  %s774 = scalar_select %p773, 0, %s772
                  %s775 = smul.u32 %s774, 48
                  %s776 = smul.u32 %s774, 48
                  %s777 = scalar_lea.vmem %s671, %s775 [#allocation2]
                  %s778 = scalar_lea.vmem %s682, %s776
                $region87: #{_forward_impl.3} parent=81 // loop_footer
                  %s754 = sadd.s32 %s752, 1
                $region88: #{_forward_impl.3} parent=81 // loop_footer_branch
                  %751 = sbr.rel target = $region84
                $region89: #{_forward_impl.3} parent=81 // loop_exit
                  _
                %s779 = sdiv.u32.pop %s678, 6
                %s780 = srem.u32.pop %s678, 6
                %s781 = smul.u32 %s779, 6
                %s782 = smul.u32 8, %s781
                %s783 = scalar_lea.vmem %s671, %s782 [#allocation2]
                %s784 = smul.u32 8, %s781
                %s785 = scalar_lea.vmem %s682, %s784
                // While loop
                $region90: #{_forward_impl.3} parent=81 // loop_pre_header
                  _
                $region91: #{_forward_impl.3} parent=81 // loop_header
                  %s787 = sphi 0, %s789
                  %p788 = scmp.ge.s32.totalorder %s787, %s780
                  %s792 = sphi 0, %s799
                  %s793 = sphi %s783, %s802
                  %s794 = sphi %s785, %s803
                $region92: #{_forward_impl.3} parent=81 // loop_header_branch
                  %791 = sbr.rel (%p788) target = $region96
                $region93: #{_forward_impl.3} parent=81 // loop_body
                  %v795 = vld [vmem:[%s793] sm:$0xff]
                  %796 = vst [vmem:[%s794] sm:$0xff] %v795
                  %s797 = sadd.s32 1, %s792
                  %p798 = scmp.ge.s32.totalorder %s797, %s780
                  %s799 = scalar_select %p798, 0, %s797
                  %s800 = smul.u32 %s799, 8
                  %s801 = smul.u32 %s799, 8
                  %s802 = scalar_lea.vmem %s783, %s800 [#allocation2]
                  %s803 = scalar_lea.vmem %s785, %s801
                $region94: #{_forward_impl.3} parent=81 // loop_footer
                  %s789 = sadd.s32 %s787, 1
                $region95: #{_forward_impl.3} parent=81 // loop_footer_branch
                  %786 = sbr.rel target = $region91
                $region96: #{_forward_impl.3} parent=81 // loop_exit
                  _
              $region82: #{_forward_impl.3} parent=59 // pred_fallthru
                _
              // Predicated region
              $region97: #{_forward_impl.3} parent=59 // pred_check
                _
              $region98: #{_forward_impl.3} parent=59 // pred_check_branch
                %805 = sbr.rel target = $region100
              $region99: #{_forward_impl.3} parent=59 // pred_region
                _
              $region100: #{_forward_impl.3} parent=59 // pred_fallthru
                _
            $region60: #{_forward_impl.3} parent=55 // pred_fallthru
              _
            // Predicated region
            $region61: #{_forward_impl.3} parent=55 // pred_check
              _
            $region62: #{_forward_impl.3} parent=55 // pred_check_branch
              %689 = sbr.rel target = $region64
            $region63: #{_forward_impl.3} parent=55 // pred_region
              %s691 = ssub.s32 256, 1
              %s692 = sdiv.u32.pop %s678, 6
              %s693 = srem.u32.pop %s678, 6
              // While loop
              $region65: #{_forward_impl.3} parent=63 // loop_pre_header
                _
              $region66: #{_forward_impl.3} parent=63 // loop_header
                %s695 = sphi 0, %s697
                %p696 = scmp.ge.s32.totalorder %s695, %s692
                %s700 = sphi 0, %s717
                %s701 = sphi %s671, %s720
                %s702 = sphi %s682, %s721
              $region67: #{_forward_impl.3} parent=63 // loop_header_branch
                %699 = sbr.rel (%p696) target = $region71
              $region68: #{_forward_impl.3} parent=63 // loop_body
                %v703 = vld [vmem:[%s701] sm:%s691]
                %704 = vst [vmem:[%s702] sm:%s691] %v703
                %v705 = vld [vmem:[%s701 + $0x8] sm:%s691]
                %706 = vst [vmem:[%s702 + $0x8] sm:%s691] %v705
                %v707 = vld [vmem:[%s701 + $0x10] sm:%s691]
                %708 = vst [vmem:[%s702 + $0x10] sm:%s691] %v707
                %v709 = vld [vmem:[%s701 + $0x18] sm:%s691]
                %710 = vst [vmem:[%s702 + $0x18] sm:%s691] %v709
                %v711 = vld [vmem:[%s701 + $0x20] sm:%s691]
                %712 = vst [vmem:[%s702 + $0x20] sm:%s691] %v711
                %v713 = vld [vmem:[%s701 + $0x28] sm:%s691]
                %714 = vst [vmem:[%s702 + $0x28] sm:%s691] %v713
                %s715 = sadd.s32 1, %s700
                %p716 = scmp.ge.s32.totalorder %s715, %s692
                %s717 = scalar_select %p716, 0, %s715
                %s718 = smul.u32 %s717, 48
                %s719 = smul.u32 %s717, 48
                %s720 = scalar_lea.vmem %s671, %s718 [#allocation2]
                %s721 = scalar_lea.vmem %s682, %s719
              $region69: #{_forward_impl.3} parent=63 // loop_footer
                %s697 = sadd.s32 %s695, 1
              $region70: #{_forward_impl.3} parent=63 // loop_footer_branch
                %694 = sbr.rel target = $region66
              $region71: #{_forward_impl.3} parent=63 // loop_exit
                _
              %s722 = sdiv.u32.pop %s678, 6
              %s723 = srem.u32.pop %s678, 6
              %s724 = smul.u32 %s722, 6
              %s725 = smul.u32 8, %s724
              %s726 = scalar_lea.vmem %s671, %s725 [#allocation2]
              %s727 = smul.u32 8, %s724
              %s728 = scalar_lea.vmem %s682, %s727
              // While loop
              $region72: #{_forward_impl.3} parent=63 // loop_pre_header
                _
              $region73: #{_forward_impl.3} parent=63 // loop_header
                %s730 = sphi 0, %s732
                %p731 = scmp.ge.s32.totalorder %s730, %s723
                %s735 = sphi 0, %s742
                %s736 = sphi %s726, %s745
                %s737 = sphi %s728, %s746
              $region74: #{_forward_impl.3} parent=63 // loop_header_branch
                %734 = sbr.rel (%p731) target = $region78
              $region75: #{_forward_impl.3} parent=63 // loop_body
                %v738 = vld [vmem:[%s736] sm:%s691]
                %739 = vst [vmem:[%s737] sm:%s691] %v738
                %s740 = sadd.s32 1, %s735
                %p741 = scmp.ge.s32.totalorder %s740, %s723
                %s742 = scalar_select %p741, 0, %s740
                %s743 = smul.u32 %s742, 8
                %s744 = smul.u32 %s742, 8
                %s745 = scalar_lea.vmem %s726, %s743 [#allocation2]
                %s746 = scalar_lea.vmem %s728, %s744
              $region76: #{_forward_impl.3} parent=63 // loop_footer
                %s732 = sadd.s32 %s730, 1
              $region77: #{_forward_impl.3} parent=63 // loop_footer_branch
                %729 = sbr.rel target = $region73
              $region78: #{_forward_impl.3} parent=63 // loop_exit
                _
            $region64: #{_forward_impl.3} parent=55 // pred_fallthru
              _
          $region56: #{_forward_impl.3} parent=51 // pred_fallthru
            _
          %806 = vnop
        $region52: #{_forward_impl.3} parent=47 // pred_fallthru
          _
      $region48: #{_forward_impl.3} parent=5 // pred_fallthru
        _
      %p807 = scmp.le.s32.totalorder 2, %s13
      // Predicated region
      $region101: #{_forward_impl.3} parent=5 // pred_check
        %p808 = pneg %p807
      $region102: #{_forward_impl.3} parent=5 // pred_check_branch
        %810 = sbr.rel (%p808) target = $region104
      $region103: #{_forward_impl.3} parent=5 // pred_region
        %s811 = ssub.s32 %s13, 2
        // Predicated region
        $region105: #{_forward_impl.3} parent=103 // pred_check
          %p812 = pneg %p204
        $region106: #{_forward_impl.3} parent=103 // pred_check_branch
          %814 = sbr.rel (%p812) target = $region108
        $region107: #{_forward_impl.3} parent=103 // pred_region
          %s815 = sand.u32 %s189, 1
          %s816 = sand.u32 %s189, 1
          %s817 = smul.addr %s816, 48
          %s818 = scalar_lea.vmem [#allocation2], %s817
        $region108: #{_forward_impl.3} parent=103 // pred_fallthru
          _
      $region104: #{_forward_impl.3} parent=5 // pred_fallthru
        _
    $region6: #{_forward_impl.3} parent=1 // loop_footer
      %s17 = sadd.s32 1, %s13
    $region7: #{_forward_impl.3} parent=1 // loop_footer_branch
      %12 = sbr.rel target = $region3
    $region8: #{_forward_impl.3} parent=1 // loop_exit
      _

// kernel: _forward_impl.2
$region0: #{_forward_impl.2}
  #allocation0 [shape = 'u32[]', space=smem, size = 0x4, offset = 0x4, fixed_abs, tag = 'smem constant byte address 0x4 - core index']
  #allocation1 [shape = 'u32[144,128]{1,0:T(1,128)}', space=vmem, size = 0x12000, scoped, tag = 'internal scratch']
  %s0 = inlined_call_operand.vmem [shape: f32[200,8], index: 0, kind: input, shape index: {}]
  %s1 = inlined_call_operand.vmem [shape: f32[200,16], index: 1, kind: input, shape index: {}]
  %s2 = inlined_call_operand.vmem [shape: f32[200,32], index: 2, kind: input, shape index: {}]
  %s3 = inlined_call_operand.vmem [shape: f32[2,8,32], index: 3, kind: output, shape index: {0}]
  %s4 = inlined_call_operand.vmem [shape: f32[2,16,32], index: 4, kind: output, shape index: {1}]
  %5 = xla_tuple %s3, %s4
  %s6 = sld [smem:[#allocation0]]
  $region57: #{_forward_impl.2} parent=0
    _
  %s8 = ssub.s32 1, %s6
  %s9 = scalar_select 0, %s8, %s6
  loop: start=0, step=1, limit=8
  $region2: #{_forward_impl.2} parent=0 // loop_pre_header
    _
  $region3: #{_forward_impl.2} parent=0 // loop_header
    %s11 = sphi 0, %s15
    %p12 = scmp.ge.s32.totalorder %s11, 8
    %s18 = sphi 0, %s30
    %s19 = sphi 0, %s26
    %s20 = sphi 0, %s18
    %s21 = sphi 0, %s19
    %s22 = sphi 0, %s20
    %s23 = sphi 0, %s21
    %s41 = sphi 0, %s43
    %s44 = sphi 0, %s41
    %s45 = sphi 0, %s44
    %s61 = sphi 0, %s45
    %s75 = sphi 0, %s77
    %s78 = sphi 0, %s75
    %s79 = sphi 0, %s78
    %s95 = sphi 0, %s79
    %s109 = sphi 0, %s111
    %s112 = sphi 0, %s109
    %s113 = sphi 0, %s112
    %s129 = sphi 0, %s113
    %s135 = sphi 0, %s137
    %s138 = sphi 0, %s135
    %s139 = sphi 0, %s138
    %s155 = sphi 0, %s139
    %s161 = sphi 0, %s163
    %s164 = sphi 0, %s161
    %s165 = sphi 0, %s164
    %s181 = sphi 0, %s165
  $region4: #{_forward_impl.2} parent=0 // loop_header_branch
    %14 = sbr.rel (%p12) target = $region8
  $region5: #{_forward_impl.2} parent=0 // loop_body
    %s16 = ssub.s32 %s11, 1
    %s17 = ssub.s32 %s11, 2
    %s24 = sadd.s32 1, %s19
    %p25 = scmp.ge.s32.totalorder %s24, 3
    %s26 = scalar_select %p25, 0, %s24
    %s27 = sadd.s32 1, %s18
    %s28 = scalar_select %p25, %s27, %s18
    %p29 = scmp.ge.s32.totalorder %s28, 2
    %s30 = scalar_select %p29, 0, %s28
    %s31 = smul.u32 %s18, 3
    %s32 = sadd.s32 %s31, %s19
    %p33 = scmp.lt.s32.totalorder %s32, 4
    %s34 = scalar_select %p33, %s32, 4
    %s35 = smul.u32 %s30, 3
    %s36 = sadd.s32 %s35, %s26
    %p37 = scmp.lt.s32.totalorder %s36, 4
    %s38 = scalar_select %p37, %s36, 4
    %s39 = ssub.s32 %s34, %s38
    %p40 = scmp.eq.s32.totalorder %s39, 0
    %s42 = sadd.s32 %s41, 1
    %s43 = scalar_select %p40, %s41, %s42
    %p46 = pneg %p40
    %p47 = scmp.eq.s32.totalorder %s11, 5
    %p48 = por %p46, %p47
    %p49 = scmp.ne.s32.totalorder %s41, %s44
    %p50 = scmp.eq.s32.totalorder %s11, 0
    %p51 = por %p49, %p50
    %p52 = scmp.ne.s32.totalorder %s41, %s44
    %p53 = scmp.eq.s32.totalorder %s16, 5
    %p54 = por %p52, %p53
    %p55 = scmp.ne.s32.totalorder %s44, %s45
    %p56 = scmp.eq.s32.totalorder %s16, 0
    %p57 = por %p55, %p56
    %p58 = scmp.ne.s32.totalorder %s44, %s45
    %p59 = scmp.eq.s32.totalorder %s17, 5
    %p60 = por %p58, %p59
    %p62 = scmp.ne.s32.totalorder %s45, %s61
    %p63 = scmp.eq.s32.totalorder %s17, 0
    %p64 = por %p62, %p63
    %s65 = smul.u32 %s18, 3
    %s66 = sadd.s32 %s65, %s19
    %p67 = scmp.lt.s32.totalorder %s66, 4
    %s68 = scalar_select %p67, %s66, 4
    %s69 = smul.u32 %s30, 3
    %s70 = sadd.s32 %s69, %s26
    %p71 = scmp.lt.s32.totalorder %s70, 4
    %s72 = scalar_select %p71, %s70, 4
    %s73 = ssub.s32 %s68, %s72
    %p74 = scmp.eq.s32.totalorder %s73, 0
    %s76 = sadd.s32 %s75, 1
    %s77 = scalar_select %p74, %s75, %s76
    %p80 = pneg %p74
    %p81 = scmp.eq.s32.totalorder %s11, 5
    %p82 = por %p80, %p81
    %p83 = scmp.ne.s32.totalorder %s75, %s78
    %p84 = scmp.eq.s32.totalorder %s11, 0
    %p85 = por %p83, %p84
    %p86 = scmp.ne.s32.totalorder %s75, %s78
    %p87 = scmp.eq.s32.totalorder %s16, 5
    %p88 = por %p86, %p87
    %p89 = scmp.ne.s32.totalorder %s78, %s79
    %p90 = scmp.eq.s32.totalorder %s16, 0
    %p91 = por %p89, %p90
    %p92 = scmp.ne.s32.totalorder %s78, %s79
    %p93 = scmp.eq.s32.totalorder %s17, 5
    %p94 = por %p92, %p93
    %p96 = scmp.ne.s32.totalorder %s79, %s95
    %p97 = scmp.eq.s32.totalorder %s17, 0
    %p98 = por %p96, %p97
    %s99 = smul.u32 %s18, 3
    %s100 = sadd.s32 %s99, %s19
    %p101 = scmp.lt.s32.totalorder %s100, 4
    %s102 = scalar_select %p101, %s100, 4
    %s103 = smul.u32 %s30, 3
    %s104 = sadd.s32 %s103, %s26
    %p105 = scmp.lt.s32.totalorder %s104, 4
    %s106 = scalar_select %p105, %s104, 4
    %s107 = ssub.s32 %s102, %s106
    %p108 = scmp.eq.s32.totalorder %s107, 0
    %s110 = sadd.s32 %s109, 1
    %s111 = scalar_select %p108, %s109, %s110
    %p114 = pneg %p108
    %p115 = scmp.eq.s32.totalorder %s11, 5
    %p116 = por %p114, %p115
    %p117 = scmp.ne.s32.totalorder %s109, %s112
    %p118 = scmp.eq.s32.totalorder %s11, 0
    %p119 = por %p117, %p118
    %p120 = scmp.ne.s32.totalorder %s109, %s112
    %p121 = scmp.eq.s32.totalorder %s16, 5
    %p122 = por %p120, %p121
    %p123 = scmp.ne.s32.totalorder %s112, %s113
    %p124 = scmp.eq.s32.totalorder %s16, 0
    %p125 = por %p123, %p124
    %p126 = scmp.ne.s32.totalorder %s112, %s113
    %p127 = scmp.eq.s32.totalorder %s17, 5
    %p128 = por %p126, %p127
    %p130 = scmp.ne.s32.totalorder %s113, %s129
    %p131 = scmp.eq.s32.totalorder %s17, 0
    %p132 = por %p130, %p131
    %s133 = ssub.s32 %s18, %s30
    %p134 = scmp.eq.s32.totalorder %s133, 0
    %s136 = sadd.s32 %s135, 1
    %s137 = scalar_select %p134, %s135, %s136
    %p140 = pneg %p134
    %p141 = scmp.eq.s32.totalorder %s11, 5
    %p142 = por %p140, %p141
    %p143 = scmp.ne.s32.totalorder %s135, %s138
    %p144 = scmp.eq.s32.totalorder %s11, 0
    %p145 = por %p143, %p144
    %p146 = scmp.ne.s32.totalorder %s135, %s138
    %p147 = scmp.eq.s32.totalorder %s16, 5
    %p148 = por %p146, %p147
    %p149 = scmp.ne.s32.totalorder %s138, %s139
    %p150 = scmp.eq.s32.totalorder %s16, 0
    %p151 = por %p149, %p150
    %p152 = scmp.ne.s32.totalorder %s138, %s139
    %p153 = scmp.eq.s32.totalorder %s17, 5
    %p154 = por %p152, %p153
    %p156 = scmp.ne.s32.totalorder %s139, %s155
    %p157 = scmp.eq.s32.totalorder %s17, 0
    %p158 = por %p156, %p157
    %s159 = ssub.s32 %s18, %s30
    %p160 = scmp.eq.s32.totalorder %s159, 0
    %s162 = sadd.s32 %s161, 1
    %s163 = scalar_select %p160, %s161, %s162
    %p166 = pneg %p160
    %p167 = scmp.eq.s32.totalorder %s11, 5
    %p168 = por %p166, %p167
    %p169 = scmp.ne.s32.totalorder %s161, %s164
    %p170 = scmp.eq.s32.totalorder %s11, 0
    %p171 = por %p169, %p170
    %p172 = scmp.ne.s32.totalorder %s161, %s164
    %p173 = scmp.eq.s32.totalorder %s16, 5
    %p174 = por %p172, %p173
    %p175 = scmp.ne.s32.totalorder %s164, %s165
    %p176 = scmp.eq.s32.totalorder %s16, 0
    %p177 = por %p175, %p176
    %p178 = scmp.ne.s32.totalorder %s164, %s165
    %p179 = scmp.eq.s32.totalorder %s17, 5
    %p180 = por %p178, %p179
    %p182 = scmp.ne.s32.totalorder %s165, %s181
    %p183 = scmp.eq.s32.totalorder %s17, 0
    %p184 = por %p182, %p183
    %p185 = scmp.le.s32.totalorder 1, %s11
    %p186 = scmp.lt.s32.totalorder %s11, 7
    %p187 = pnand %p185, %p186
    %p188 = pneg %p187
    // Predicated region
    $region9: #{_forward_impl.2} parent=5 // pred_check
      _
    $region10: #{_forward_impl.2} parent=5 // pred_check_branch
      %190 = sbr.rel (%p187) target = $region12
    $region11: #{_forward_impl.2} parent=5 // pred_region
      %s191 = ssub.s32 %s11, 1
    $region12: #{_forward_impl.2} parent=5 // pred_fallthru
      _
    %p192 = scmp.lt.s32.totalorder %s11, 6
    // Predicated region
    $region13: #{_forward_impl.2} parent=5 // pred_check
      %p193 = pneg %p192
    $region14: #{_forward_impl.2} parent=5 // pred_check_branch
      %195 = sbr.rel (%p193) target = $region16
    $region15: #{_forward_impl.2} parent=5 // pred_region
      // Predicated region
      $region17: #{_forward_impl.2} parent=15 // pred_check
        %p196 = pneg %p51
      $region18: #{_forward_impl.2} parent=15 // pred_check_branch
        %198 = sbr.rel (%p196) target = $region20
      $region19: #{_forward_impl.2} parent=15 // pred_region
        %s199 = smul.u32 %s18, 3
        %s200 = sadd.s32 %s199, %s19
        %p201 = scmp.lt.s32.totalorder %s200, 4
        %s202 = scalar_select %p201, %s200, 4
        %s203 = smul.u32 6, %s202
        %s204 = ssub.s32 25, %s203
        %p205 = scmp.lt.s32.totalorder %s204, 6
        %s206 = scalar_select %p205, %s204, 6
        %s207 = smul.u32 128, %s206
        %p208 = scmp.lt.s32.totalorder %s203, 24
        %s209 = scalar_select %p208, %s203, 24
        %s210 = smul.addr %s209, 8
        %s211 = scalar_lea.vmem %s0, %s210
        %s212 = smul.u32 %s18, 3
        %s213 = sadd.s32 %s212, %s19
        %p214 = scmp.lt.s32.totalorder %s213, 4
        %s215 = scalar_select %p214, %s213, 4
        %s216 = smul.u32 6, %s215
        %s217 = ssub.s32 25, %s216
        %p218 = scmp.lt.s32.totalorder %s217, 6
        %s219 = scalar_select %p218, %s217, 6
        %s220 = smul.u32 128, %s219
      $region20: #{_forward_impl.2} parent=15 // pred_fallthru
        _
      // Predicated region
      $region21: #{_forward_impl.2} parent=15 // pred_check
        %p221 = pneg %p85
      $region22: #{_forward_impl.2} parent=15 // pred_check_branch
        %223 = sbr.rel (%p221) target = $region24
      $region23: #{_forward_impl.2} parent=15 // pred_region
        %s224 = smul.u32 %s18, 3
        %s225 = sadd.s32 %s224, %s19
        %p226 = scmp.lt.s32.totalorder %s225, 4
        %s227 = scalar_select %p226, %s225, 4
        %s228 = smul.u32 6, %s227
        %s229 = ssub.s32 25, %s228
        %p230 = scmp.lt.s32.totalorder %s229, 6
        %s231 = scalar_select %p230, %s229, 6
        %s232 = smul.u32 128, %s231
        %p233 = scmp.lt.s32.totalorder %s228, 24
        %s234 = scalar_select %p233, %s228, 24
        %s235 = smul.addr %s234, 8
        %s236 = scalar_lea.vmem %s1, %s235
        %s237 = smul.u32 %s18, 3
        %s238 = sadd.s32 %s237, %s19
        %p239 = scmp.lt.s32.totalorder %s238, 4
        %s240 = scalar_select %p239, %s238, 4
        %s241 = smul.u32 6, %s240
        %s242 = ssub.s32 25, %s241
        %p243 = scmp.lt.s32.totalorder %s242, 6
        %s244 = scalar_select %p243, %s242, 6
        %s245 = smul.u32 128, %s244
      $region24: #{_forward_impl.2} parent=15 // pred_fallthru
        _
      // Predicated region
      $region25: #{_forward_impl.2} parent=15 // pred_check
        %p246 = pneg %p119
      $region26: #{_forward_impl.2} parent=15 // pred_check_branch
        %248 = sbr.rel (%p246) target = $region28
      $region27: #{_forward_impl.2} parent=15 // pred_region
        %s249 = smul.u32 %s18, 3
        %s250 = sadd.s32 %s249, %s19
        %p251 = scmp.lt.s32.totalorder %s250, 4
        %s252 = scalar_select %p251, %s250, 4
        %s253 = smul.u32 6, %s252
        %s254 = ssub.s32 25, %s253
        %p255 = scmp.lt.s32.totalorder %s254, 6
        %s256 = scalar_select %p255, %s254, 6
        %s257 = smul.u32 128, %s256
        %p258 = scmp.lt.s32.totalorder %s253, 24
        %s259 = scalar_select %p258, %s253, 24
        %s260 = smul.addr %s259, 8
        %s261 = scalar_lea.vmem %s2, %s260
        %s262 = smul.u32 %s18, 3
        %s263 = sadd.s32 %s262, %s19
        %p264 = scmp.lt.s32.totalorder %s263, 4
        %s265 = scalar_select %p264, %s263, 4
        %s266 = smul.u32 6, %s265
        %s267 = ssub.s32 25, %s266
        %p268 = scmp.lt.s32.totalorder %s267, 6
        %s269 = scalar_select %p268, %s267, 6
        %s270 = smul.u32 128, %s269
      $region28: #{_forward_impl.2} parent=15 // pred_fallthru
        _
    $region16: #{_forward_impl.2} parent=5 // pred_fallthru
      _
    %p271 = scmp.le.s32.totalorder 1, %s11
    %p272 = scmp.lt.s32.totalorder %s11, 7
    %p273 = pnand %p271, %p272
    %p274 = pneg %p273
    // Predicated region
    $region29: #{_forward_impl.2} parent=5 // pred_check
      _
    $region30: #{_forward_impl.2} parent=5 // pred_check_branch
      %276 = sbr.rel (%p273) target = $region32
    $region31: #{_forward_impl.2} parent=5 // pred_region
      %s277 = ssub.s32 %s11, 1
      %s278 = smul.u32 %s20, 3
      %s279 = sadd.s32 %s278, %s21
      %p280 = scmp.lt.s32.totalorder %s279, 4
      %s281 = scalar_select %p280, %s279, 4
      %s282 = smul.u32 6, %s281
      %s283 = ssub.s32 25, %s282
      %p284 = scmp.lt.s32.totalorder %s283, 6
      %s285 = scalar_select %p284, %s283, 6
      %s286 = smul.u32 128, %s285
      %p287 = scmp.lt.s32.totalorder %s282, 24
      %s288 = scalar_select %p287, %s282, 24
      %s289 = smul.addr %s288, 8
      %s290 = scalar_lea.vmem %s0, %s289
      %p291 = pneg %p57
      %p292 = pneg %p54
      %s293 = smul.u32 %s20, 3
      %s294 = sadd.s32 %s293, %s21
      %p295 = scmp.lt.s32.totalorder %s294, 4
      %s296 = scalar_select %p295, %s294, 4
      %s297 = smul.u32 6, %s296
      %s298 = ssub.s32 25, %s297
      %p299 = scmp.lt.s32.totalorder %s298, 6
      %s300 = scalar_select %p299, %s298, 6
      %s301 = smul.u32 128, %s300
      %p302 = scmp.lt.s32.totalorder %s297, 24
      %s303 = scalar_select %p302, %s297, 24
      %s304 = smul.addr %s303, 8
      %s305 = scalar_lea.vmem %s1, %s304
      %p306 = pneg %p91
      %p307 = pneg %p88
      %s308 = smul.u32 %s20, 3
      %s309 = sadd.s32 %s308, %s21
      %p310 = scmp.lt.s32.totalorder %s309, 4
      %s311 = scalar_select %p310, %s309, 4
      %s312 = smul.u32 6, %s311
      %s313 = ssub.s32 25, %s312
      %p314 = scmp.lt.s32.totalorder %s313, 6
      %s315 = scalar_select %p314, %s313, 6
      %s316 = smul.u32 128, %s315
      %p317 = scmp.lt.s32.totalorder %s312, 24
      %s318 = scalar_select %p317, %s312, 24
      %s319 = smul.addr %s318, 8
      %s320 = scalar_lea.vmem %s2, %s319
      %p321 = pneg %p125
      %p322 = pneg %p122
      %p323 = pneg %p151
      %p324 = pneg %p148
      %p325 = scmp.lt.s32.totalorder %s20, 1
      %s326 = scalar_select %p325, %s20, 1
      %s327 = smul.addr %s326, 8
      %s328 = scalar_lea.vmem %s3, %s327
      %p329 = pneg %p177
      %p330 = pneg %p174
      %p331 = scmp.lt.s32.totalorder %s20, 1
      %s332 = scalar_select %p331, %s20, 1
      %s333 = smul.addr %s332, 2
      %s334 = smul.addr %s333, 8
      %s335 = scalar_lea.vmem %s4, %s334
      %s336 = smul.u32 %s20, 3
      %s337 = sadd.s32 %s336, %s21
      %p338 = scmp.lt.s32.totalorder %s337, 4
      %s339 = scalar_select %p338, %s337, 4
      %s340 = smul.u32 6, %s339
      %s341 = ssub.s32 25, %s340
      %p342 = scmp.lt.s32.totalorder %s341, 6
      %s343 = scalar_select %p342, %s341, 6
      %s344 = smul.u32 128, %s343
      %p345 = scmp.lt.s32.totalorder %s340, 24
      %s346 = scalar_select %p345, %s340, 24
      %s347 = smul.addr %s346, 8
      %s348 = scalar_lea.vmem %s0, %s347
      %s349 = smul.u32 %s20, 3
      %s350 = sadd.s32 %s349, %s21
      %p351 = scmp.lt.s32.totalorder %s350, 4
      %s352 = scalar_select %p351, %s350, 4
      %s353 = smul.u32 6, %s352
      %s354 = ssub.s32 25, %s353
      %p355 = scmp.lt.s32.totalorder %s354, 6
      %s356 = scalar_select %p355, %s354, 6
      %s357 = smul.u32 128, %s356
      %s358 = smul.u32 %s20, 3
      %s359 = sadd.s32 %s358, %s21
      %p360 = scmp.lt.s32.totalorder %s359, 4
      %s361 = scalar_select %p360, %s359, 4
      %s362 = smul.u32 6, %s361
      %s363 = ssub.s32 25, %s362
      %p364 = scmp.lt.s32.totalorder %s363, 6
      %s365 = scalar_select %p364, %s363, 6
      %s366 = smul.u32 128, %s365
      %p367 = scmp.lt.s32.totalorder %s362, 24
      %s368 = scalar_select %p367, %s362, 24
      %s369 = smul.addr %s368, 8
      %s370 = scalar_lea.vmem %s1, %s369
      %s371 = smul.u32 %s20, 3
      %s372 = sadd.s32 %s371, %s21
      %p373 = scmp.lt.s32.totalorder %s372, 4
      %s374 = scalar_select %p373, %s372, 4
      %s375 = smul.u32 6, %s374
      %s376 = ssub.s32 25, %s375
      %p377 = scmp.lt.s32.totalorder %s376, 6
      %s378 = scalar_select %p377, %s376, 6
      %s379 = smul.u32 128, %s378
      %s380 = smul.u32 %s20, 3
      %s381 = sadd.s32 %s380, %s21
      %p382 = scmp.lt.s32.totalorder %s381, 4
      %s383 = scalar_select %p382, %s381, 4
      %s384 = smul.u32 6, %s383
      %s385 = ssub.s32 25, %s384
      %p386 = scmp.lt.s32.totalorder %s385, 6
      %s387 = scalar_select %p386, %s385, 6
      %s388 = smul.u32 128, %s387
      %p389 = scmp.lt.s32.totalorder %s384, 24
      %s390 = scalar_select %p389, %s384, 24
      %s391 = smul.addr %s390, 8
      %s392 = scalar_lea.vmem %s2, %s391
      %s393 = smul.u32 %s20, 3
      %s394 = sadd.s32 %s393, %s21
      %p395 = scmp.lt.s32.totalorder %s394, 4
      %s396 = scalar_select %p395, %s394, 4
      %s397 = smul.u32 6, %s396
      %s398 = ssub.s32 25, %s397
      %p399 = scmp.lt.s32.totalorder %s398, 6
      %s400 = scalar_select %p399, %s398, 6
      %s401 = smul.u32 128, %s400
      %p402 = scmp.lt.s32.totalorder %s20, 1
      %s403 = scalar_select %p402, %s20, 1
      %s404 = smul.addr %s403, 8
      %s405 = scalar_lea.vmem %s3, %s404
      %p406 = scmp.lt.s32.totalorder %s20, 1
      %s407 = scalar_select %p406, %s20, 1
      %s408 = smul.addr %s407, 2
      %s409 = smul.addr %s408, 8
      %s410 = scalar_lea.vmem %s4, %s409
      %p412 = scmp.eq.s32.totalorder %s21, 0
      // Predicated region
      $region33: #{_forward_impl.2} parent=31 // pred_check
        %p413 = pneg %p412
      $region34: #{_forward_impl.2} parent=31 // pred_check_branch
        %415 = sbr.rel (%p413) target = $region36
      $region35: #{_forward_impl.2} parent=31 // pred_region
        %vm416 = vcmask 261120
        %417 = vst.msk [vmem:[%s405] sm:$0xff] %vm416, 0.0
        %418 = vst.msk [vmem:[%s410] sm:$0xff] %vm416, 0.0
        %419 = vst.msk [vmem:[%s410 + $0x8] sm:$0xff] %vm416, 0.0
      $region36: #{_forward_impl.2} parent=31 // pred_fallthru
        _
      %v420 = vld [vmem:[%s392] sm:$0xff]
      %v421 = vld [vmem:[%s392 + $0x8] sm:$0xff]
      %v422 = vld [vmem:[%s392 + $0x10] sm:$0xff]
      %v423 = vld [vmem:[%s392 + $0x18] sm:$0xff]
      %v424 = vld [vmem:[%s392 + $0x20] sm:$0xff]
      %v425 = vld [vmem:[%s392 + $0x28] sm:$0xff]
      %v426 = vld [vmem:[%s348] sm:$0xff]
      %v427 = vld [vmem:[%s348 + $0x8] sm:$0xff]
      %v428 = vld [vmem:[%s348 + $0x10] sm:$0xff]
      %v429 = vld [vmem:[%s348 + $0x18] sm:$0xff]
      %v430 = vld [vmem:[%s348 + $0x20] sm:$0xff]
      %v431 = vld [vmem:[%s348 + $0x28] sm:$0xff]
      %v432 = vld [vmem:[%s370] sm:$0xff]
      %v433 = vld [vmem:[%s370 + $0x8] sm:$0xff]
      %v434 = vld [vmem:[%s370 + $0x10] sm:$0xff]
      %v435 = vld [vmem:[%s370 + $0x18] sm:$0xff]
      %v436 = vld [vmem:[%s370 + $0x20] sm:$0xff]
      %v437 = vld [vmem:[%s370 + $0x28] sm:$0xff]
      %s438 = smul.u32 %s20, 3
      %s439 = sadd.s32 %s438, %s21
      %s440 = smul.u32 %s439, 48
      %v441 = vlaneseq
      %v442 = vshrl.u32 %v441, 7
      %v443 = vadd.s32 %v442, 8
      %v444 = vadd.s32 %v442, 16
      %v445 = vadd.s32 %v442, 24
      %v446 = vadd.s32 %v442, 32
      %v447 = vadd.s32 %v442, 40
      %v448 = vstv %s440
      %v449 = vadd.s32 %v448, %v442
      %v450 = vadd.s32 %v448, %v443
      %v451 = vadd.s32 %v448, %v444
      %v452 = vadd.s32 %v448, %v445
      %v453 = vadd.s32 %v448, %v446
      %v454 = vadd.s32 %v448, %v447
      %vm455 = vcmp.lt.s32.totalorder %v449, 200
      %vm456 = vcmp.lt.s32.totalorder %v450, 200
      %vm457 = vcmp.lt.s32.totalorder %v451, 200
      %vm458 = vcmp.lt.s32.totalorder %v452, 200
      %vm459 = vcmp.lt.s32.totalorder %v453, 200
      %vm460 = vcmp.lt.s32.totalorder %v454, 200
      %v461 = vsel %vm455, 1, 0
      %v462 = vsel %vm456, 1, 0
      %v463 = vsel %vm457, 1, 0
      %v464 = vsel %vm458, 1, 0
      %v465 = vsel %vm459, 1, 0
      %v466 = vsel %vm460, 1, 0
      %vm467 = vcmp.eq.s32.totalorder %v461, 1
      %vm468 = vcmp.eq.s32.totalorder %v462, 1
      %vm469 = vcmp.eq.s32.totalorder %v463, 1
      %vm470 = vcmp.eq.s32.totalorder %v464, 1
      %vm471 = vcmp.eq.s32.totalorder %v465, 1
      %vm472 = vcmp.eq.s32.totalorder %v466, 1
      %v473 = vsel %vm467, %v420, 0.0
      %v474 = vsel %vm468, %v421, 0.0
      %v475 = vsel %vm469, %v422, 0.0
      %v476 = vsel %vm470, %v423, 0.0
      %v477 = vsel %vm471, %v424, 0.0
      %v478 = vsel %vm472, %v425, 0.0
      %v479 = vsel %vm467, %v426, 0.0
      %v480 = vsel %vm468, %v427, 0.0
      %v481 = vsel %vm469, %v428, 0.0
      %v482 = vsel %vm470, %v429, 0.0
      %v483 = vsel %vm471, %v430, 0.0
      %v484 = vsel %vm472, %v431, 0.0
      %v485 = vsel %vm467, %v432, 0.0
      %v486 = vsel %vm468, %v433, 0.0
      %v487 = vsel %vm469, %v434, 0.0
      %v488 = vsel %vm470, %v435, 0.0
      %v489 = vsel %vm471, %v436, 0.0
      %v490 = vsel %vm472, %v437, 0.0
      %v491 = vpack.c.bf16 %v474, %v473
      %v492 = vpack.c.bf16 %v476, %v475
      %v493 = vpack.c.bf16 %v478, %v477
      %v494 = vld [vmem:[%s405] sm:$0xff]
      %v495 = vpack.c.bf16 %v480, %v479
      %v496 = vpack.c.bf16 %v482, %v481
      %v497 = vpack.c.bf16 %v484, %v483
      %498 = vxpose.xlu0.c.b16.start [1/8] %v495, 128
      %499 = vxpose.xlu0.c.b16.cont [2/8] %v496, 128
      %500 = vxpose.xlu0.c.b16.cont [3/8] %v497, 128
      %501 = vxpose.xlu0.c.b16.cont [4/8] 0, 128
      %502 = vxpose.xlu0.c.b16.cont [5/8] 0, 128
      %503 = vxpose.xlu0.c.b16.cont [6/8] 0, 128
      %504 = vxpose.xlu0.c.b16.cont [7/8] 0, 128
      %505 = vxpose.xlu0.c.b16.end [8/8] 0, 128
      %v506 = vpop.trf.xlu0
      %v507 = vpop.trf.xlu0
      %v508 = vpop.trf.xlu0
      %v509 = vpop.trf.xlu0
      %v510 = vpop.trf.xlu0
      %v511 = vpop.trf.xlu0
      %v512 = vpop.trf.xlu0
      %v513 = vpop.trf.xlu0
      %vm514 = vcmask 392192
      %v516 = vsel %vm514, %v506, 0
      %518 = vmatprep.subr.bf16.mxu0 0
      %519 = vmatpush1.bf16.msra.mxu0 0
      %520 = vmatprep.subr.bf16.mxu0 0
      %521 = vmatpush1.bf16.msra.mxu0 0
      %522 = vmatprep.subr.bf16.mxu0 0
      %523 = vmatpush1.bf16.msra.mxu0 0
      %524 = vmatprep.subr.bf16.mxu0 0
      %525 = vmatpush1.bf16.msra.mxu0 0
      %526 = vmatprep.subr.bf16.mxu0 0
      %527 = vmatpush1.bf16.msra.mxu0 0
      %528 = vmatprep.subr.bf16.mxu0 0
      %529 = vmatpush1.bf16.msra.mxu0 %v493
      %530 = vmatprep.subr.bf16.mxu0 0
      %531 = vmatpush1.bf16.msra.mxu0 %v492
      %532 = vmatprep.subr.bf16.mxu0 0
      %533 = vmatpush1.bf16.msra.mxu0 %v491
      %534 = vmatprep.subr.bf16.mxu0 0
      %535 = vmatpush2.bf16.msra.mxu0 0
      %536 = vmatprep.subr.bf16.mxu0 0
      %537 = vmatpush2.bf16.msra.mxu0 0
      %538 = vmatprep.subr.bf16.mxu0 0
      %539 = vmatpush2.bf16.msra.mxu0 0
      %540 = vmatprep.subr.bf16.mxu0 0
      %541 = vmatpush2.bf16.msra.mxu0 0
      %542 = vmatprep.subr.bf16.mxu0 0
      %543 = vmatpush2.bf16.msra.mxu0 0
      %544 = vmatprep.subr.bf16.mxu0 0
      %545 = vmatpush2.bf16.msra.mxu0 0
      %546 = vmatprep.subr.bf16.mxu0 0
      %547 = vmatpush2.bf16.msra.mxu0 0
      %548 = vmatprep.subr.bf16.mxu0 0
      %549 = vmatpush2.bf16.msra.mxu0 0
      %550 = vmatprep.mubr.bf16.mxu0 0
      %551 = vmatmul.mubr.bf16.gmra.mxu0 %v516
      %v552 = vpop.f32.mrf.mxu0
      %v553 = vadd.f32 0.0, %v552
      %v554 = vpop.f32.mrf.mxu0
      %v555 = vpop.f32.mrf.mxu0
      %v556 = vpop.f32.mrf.mxu0
      %557 = vdwg.mxu0
      %v558 = vadd.f32 %v494, %v553
      %vm559 = vcmask 261120
      %560 = vst.msk [vmem:[%s405] sm:$0xff] %vm559, %v558
      %v561 = vld [vmem:[%s410] sm:$0xff]
      %v562 = vld [vmem:[%s410 + $0x8] sm:$0xff]
      %v563 = vpack.c.bf16 %v486, %v485
      %v564 = vpack.c.bf16 %v488, %v487
      %v565 = vpack.c.bf16 %v490, %v489
      %566 = vxpose.xlu0.c.b16.start [1/8] %v563, 128
      %567 = vxpose.xlu0.c.b16.cont [2/8] %v564, 128
      %568 = vxpose.xlu0.c.b16.cont [3/8] %v565, 128
      %569 = vxpose.xlu0.c.b16.cont [4/8] 0, 128
      %570 = vxpose.xlu0.c.b16.cont [5/8] 0, 128
      %571 = vxpose.xlu0.c.b16.cont [6/8] 0, 128
      %572 = vxpose.xlu0.c.b16.cont [7/8] 0, 128
      %573 = vxpose.xlu0.c.b16.end [8/8] 0, 128
      %v574 = vpop.trf.xlu0
      %v575 = vpop.trf.xlu0
      %v576 = vpop.trf.xlu0
      %v577 = vpop.trf.xlu0
      %v578 = vpop.trf.xlu0
      %v579 = vpop.trf.xlu0
      %v580 = vpop.trf.xlu0
      %v581 = vpop.trf.xlu0
      %v583 = vsel %vm514, %v574, 0
      %585 = vmatprep.subr.bf16.mxu0 0
      %586 = vmatpush1.bf16.msra.mxu0 0
      %587 = vmatprep.subr.bf16.mxu0 0
      %588 = vmatpush1.bf16.msra.mxu0 0
      %589 = vmatprep.subr.bf16.mxu0 0
      %590 = vmatpush1.bf16.msra.mxu0 0
      %591 = vmatprep.subr.bf16.mxu0 0
      %592 = vmatpush1.bf16.msra.mxu0 0
      %593 = vmatprep.subr.bf16.mxu0 0
      %594 = vmatpush1.bf16.msra.mxu0 0
      %595 = vmatprep.subr.bf16.mxu0 0
      %596 = vmatpush1.bf16.msra.mxu0 %v493
      %597 = vmatprep.subr.bf16.mxu0 0
      %598 = vmatpush1.bf16.msra.mxu0 %v492
      %599 = vmatprep.subr.bf16.mxu0 0
      %600 = vmatpush1.bf16.msra.mxu0 %v491
      %601 = vmatprep.subr.bf16.mxu0 0
      %602 = vmatpush2.bf16.msra.mxu0 0
      %603 = vmatprep.subr.bf16.mxu0 0
      %604 = vmatpush2.bf16.msra.mxu0 0
      %605 = vmatprep.subr.bf16.mxu0 0
      %606 = vmatpush2.bf16.msra.mxu0 0
      %607 = vmatprep.subr.bf16.mxu0 0
      %608 = vmatpush2.bf16.msra.mxu0 0
      %609 = vmatprep.subr.bf16.mxu0 0
      %610 = vmatpush2.bf16.msra.mxu0 0
      %611 = vmatprep.subr.bf16.mxu0 0
      %612 = vmatpush2.bf16.msra.mxu0 0
      %613 = vmatprep.subr.bf16.mxu0 0
      %614 = vmatpush2.bf16.msra.mxu0 0
      %615 = vmatprep.subr.bf16.mxu0 0
      %616 = vmatpush2.bf16.msra.mxu0 0
      %617 = vmatprep.mubr.bf16.mxu0 0
      %618 = vmatmul.mubr.bf16.gmra.mxu0 %v583
      %v619 = vpop.f32.mrf.mxu0
      %v620 = vadd.f32 0.0, %v619
      %v621 = vpop.f32.mrf.mxu0
      %v622 = vpop.f32.mrf.mxu0
      %v623 = vadd.f32 0.0, %v622
      %v624 = vpop.f32.mrf.mxu0
      %625 = vdwg.mxu0
      %v626 = vadd.f32 %v561, %v620
      %v627 = vadd.f32 %v562, %v623
      %628 = vst.msk [vmem:[%s410] sm:$0xff] %vm559, %v626
      %629 = vst.msk [vmem:[%s410 + $0x8] sm:$0xff] %vm559, %v627
      %p630 = scmp.lt.s32.totalorder %s20, 1
      %s631 = scalar_select %p630, %s20, 1
      %s632 = smul.addr %s631, 8
      %s633 = scalar_lea.vmem %s3, %s632
      %p634 = scmp.lt.s32.totalorder %s20, 1
      %s635 = scalar_select %p634, %s20, 1
      %s636 = smul.addr %s635, 2
      %s637 = smul.addr %s636, 8
      %s638 = scalar_lea.vmem %s4, %s637
      // Predicated region
      $region37: #{_forward_impl.2} parent=31 // pred_check
        %p639 = pneg %p148
      $region38: #{_forward_impl.2} parent=31 // pred_check_branch
        %641 = sbr.rel (%p639) target = $region40
      $region39: #{_forward_impl.2} parent=31 // pred_region
        _
      $region40: #{_forward_impl.2} parent=31 // pred_fallthru
        _
      // Predicated region
      $region41: #{_forward_impl.2} parent=31 // pred_check
        %p642 = pneg %p174
      $region42: #{_forward_impl.2} parent=31 // pred_check_branch
        %644 = sbr.rel (%p642) target = $region44
      $region43: #{_forward_impl.2} parent=31 // pred_region
        _
      $region44: #{_forward_impl.2} parent=31 // pred_fallthru
        _
    $region32: #{_forward_impl.2} parent=5 // pred_fallthru
      _
    %p645 = scmp.le.s32.totalorder 2, %s11
    // Predicated region
    $region45: #{_forward_impl.2} parent=5 // pred_check
      %p646 = pneg %p645
    $region46: #{_forward_impl.2} parent=5 // pred_check_branch
      %648 = sbr.rel (%p646) target = $region48
    $region47: #{_forward_impl.2} parent=5 // pred_region
      %s649 = ssub.s32 %s11, 2
      // Predicated region
      $region49: #{_forward_impl.2} parent=47 // pred_check
        %p650 = pneg %p154
      $region50: #{_forward_impl.2} parent=47 // pred_check_branch
        %652 = sbr.rel (%p650) target = $region52
      $region51: #{_forward_impl.2} parent=47 // pred_region
        %p653 = scmp.lt.s32.totalorder %s22, 1
        %s654 = scalar_select %p653, %s22, 1
        %s655 = smul.addr %s654, 8
        %s656 = scalar_lea.vmem %s3, %s655
      $region52: #{_forward_impl.2} parent=47 // pred_fallthru
        _
      // Predicated region
      $region53: #{_forward_impl.2} parent=47 // pred_check
        %p657 = pneg %p180
      $region54: #{_forward_impl.2} parent=47 // pred_check_branch
        %659 = sbr.rel (%p657) target = $region56
      $region55: #{_forward_impl.2} parent=47 // pred_region
        %p660 = scmp.lt.s32.totalorder %s22, 1
        %s661 = scalar_select %p660, %s22, 1
        %s662 = smul.addr %s661, 2
        %s663 = smul.addr %s662, 8
        %s664 = scalar_lea.vmem %s4, %s663
      $region56: #{_forward_impl.2} parent=47 // pred_fallthru
        _
    $region48: #{_forward_impl.2} parent=5 // pred_fallthru
      _
  $region6: #{_forward_impl.2} parent=0 // loop_footer
    %s15 = sadd.s32 1, %s11
  $region7: #{_forward_impl.2} parent=0 // loop_footer_branch
    %10 = sbr.rel target = $region3
  $region8: #{_forward_impl.2} parent=0 // loop_exit
    _

</llo_original>
